<compile_context>
chip_gen: v7x
topology: tpu7x:2x2x1
jax: 0.10.0
libtpu: 0.0.40
codegen_flags: <defaults>
</compile_context>

<pallas_src>
import functools

import jax
import jax.numpy as jnp
from jax.experimental import pallas as pl
from jax.experimental.pallas import tpu as pltpu

_LANE = 128  # lane width used for the lane-dense pratings slab


# ----------------------------------------------------------------------------
# Fused Pallas kernel
# ----------------------------------------------------------------------------
def _apply_layer(x_f32, w_ref, b_ref, act):
    """y = act(x @ W + b); bf16 MXU inputs, f32 accumulation, f32 elementwise."""
    y = jnp.dot(x_f32.astype(jnp.bfloat16), w_ref[...],
                preferred_element_type=jnp.float32)
    y = y + b_ref[...]                      # (1, N) f32 broadcast over batch
    if act == "relu":
        y = jnp.maximum(y, 0.0)
    elif act == "sigmoid":
        y = jax.nn.sigmoid(y)
    return y


def _vae_fused_kernel(
    imgs_ref, eps_ref, usz_ref,
    ew0, eb0, ew1, eb1, ew2, eb2, ew3, eb3,
    dw0, db0, dw1, db1, dw2, db2, dw3, db3,
    recon_ref, pr_ref, mu_ref, lv_ref,
    *, z_dim,
):
    # ---- encoder: Linear->ReLU x3, final Linear ----
    h = imgs_ref[...]
    h = _apply_layer(h, ew0, eb0, "relu")
    h = _apply_layer(h, ew1, eb1, "relu")
    h = _apply_layer(h, ew2, eb2, "relu")
    h = _apply_layer(h, ew3, eb3, "none")

    # ---- mu / log_var split (torch.chunk(h, 2, dim=1)) ----
    mu = h[:, :z_dim]
    lv = h[:, z_dim:]
    mu_ref[...] = mu
    lv_ref[...] = lv

    # ---- reparameterize: z = mu + eps * exp(log_var / 2) ----
    z = mu + eps_ref[...] * jnp.exp(lv * 0.5)

    # ---- per-example rating: (z * usz).sum(1), lane-dense slab output ----
    pr = jnp.sum(z * usz_ref[...], axis=1, keepdims=True)
    pr_ref[...] = jnp.broadcast_to(pr, pr_ref.shape)

    # ---- decoder: Linear->ReLU x3, final Linear->Sigmoid ----
    d = _apply_layer(z, dw0, db0, "relu")
    d = _apply_layer(d, dw1, db1, "relu")
    d = _apply_layer(d, dw2, db2, "relu")
    d = _apply_layer(d, dw3, db3, "sigmoid")
    recon_ref[...] = d


# ----------------------------------------------------------------------------
# Wrapper
# ----------------------------------------------------------------------------
def vae_forward(params, imgs, uids, eps, *, batch_tile=None):
    """Matches VAE.forward: returns (reconimgs, usz, pratings, mu, log_var)."""
    B, image_size = imgs.shape
    z_dim = params["useremb"].shape[1]

    # Embedding lookup: exact gather, tiny; kept as wrapper glue.
    usz = jnp.take(params["useremb"], uids, axis=0)          # (B, z_dim) f32

    if batch_tile is None:
        batch_tile = B if B <= 128 else 128
    assert B % batch_tile == 0, "batch must be a multiple of the batch tile"
    grid = (B // batch_tile,)

    def row_spec(n):
        return pl.BlockSpec((batch_tile, n), lambda i: (i, 0))

    def full_spec(shape):
        return pl.BlockSpec(shape, lambda i: (0, 0))

    weight_args, weight_specs = [], []
    for w, b in params["enc"] + params["dec"]:
        weight_args += [w, b]
        weight_specs += [full_spec(w.shape), full_spec(b.shape)]

    kern = functools.partial(_vae_fused_kernel, z_dim=z_dim)

    recon, pr_slab, mu, lv = pl.pallas_call(
        kern,
        out_shape=(
            jax.ShapeDtypeStruct((B, image_size), jnp.float32),
            jax.ShapeDtypeStruct((B, _LANE), jnp.float32),
            jax.ShapeDtypeStruct((B, z_dim), jnp.float32),
            jax.ShapeDtypeStruct((B, z_dim), jnp.float32),
        ),
        grid=grid,
        in_specs=[row_spec(image_size), row_spec(z_dim), row_spec(z_dim)]
                 + weight_specs,
        out_specs=(
            row_spec(image_size),
            row_spec(_LANE),
            row_spec(z_dim),
            row_spec(z_dim),
        ),
        compiler_params=pltpu.CompilerParams(
            dimension_semantics=("parallel",),
        ),
    )(imgs, eps, usz, *weight_args)

    return recon, usz, pr_slab[:, 0], mu, lv


# ----------------------------------------------------------------------------
# Parameter construction (PyTorch-style init; weights stored bf16 [in, out],
# biases stored f32 pre-shaped to (1, N))
# ----------------------------------------------------------------------------
def _init_linear(key, in_f, out_f):
    kw, kb = jax.random.split(key)
    bound = 1.0 / float(in_f) ** 0.5
    w = jax.random.uniform(kw, (in_f, out_f), jnp.float32, -bound, bound)
    b = jax.random.uniform(kb, (out_f,), jnp.float32, -bound, bound)
    return w.astype(jnp.bfloat16), b.reshape(1, out_f)


def init_vae_params(key, image_size, h_dim, z_dim, nusers):
    h15 = int(h_dim * 1.5)
    enc_dims = [(image_size, h_dim * 2), (h_dim * 2, h15),
                (h15, h_dim), (h_dim, z_dim * 2)]
    dec_dims = [(z_dim, h_dim), (h_dim, h15),
                (h15, h_dim * 2), (h_dim * 2, image_size)]
    keys = jax.random.split(key, len(enc_dims) + len(dec_dims) + 1)
    enc = [_init_linear(k, i, o) for k, (i, o) in zip(keys[:4], enc_dims)]
    dec = [_init_linear(k, i, o) for k, (i, o) in zip(keys[4:8], dec_dims)]
    useremb = jax.random.normal(keys[8], (nusers, z_dim), jnp.float32)
    return {"enc": enc, "dec": dec, "useremb": useremb}


# ----------------------------------------------------------------------------
# Pure-JAX reference (same bf16-operand / f32-accumulate math) for validation
# ----------------------------------------------------------------------------
def _ref_forward(params, imgs, uids, eps):
    def layer(x, w, b, act):
        y = jnp.dot(x.astype(jnp.bfloat16), w,
                    preferred_element_type=jnp.float32) + b
        if act == "relu":
            y = jnp.maximum(y, 0.0)
        elif act == "sigmoid":
            y = jax.nn.sigmoid(y)
        return y

    h = imgs
    for (w, b), act in zip(params["enc"], ["relu", "relu", "relu", "none"]):
        h = layer(h, w, b, act)
    z_dim = params["useremb"].shape[1]
    mu, lv = h[:, :z_dim], h[:, z_dim:]
    z = mu + eps * jnp.exp(lv * 0.5)
    usz = jnp.take(params["useremb"], uids, axis=0)
    pr = jnp.sum(z * usz, axis=1)
    d = z
    for (w, b), act in zip(params["dec"], ["relu", "relu", "relu", "sigmoid"]):
        d = layer(d, w, b, act)
    return d, usz, pr, mu, lv


# ----------------------------------------------------------------------------
# Demo
# ----------------------------------------------------------------------------
if __name__ == "__main__":
    # Scaled-down shapes consistent with the module (sx/h_dim/z_dim/nusers)
    SX = 16
    IMAGE_SIZE = SX * SX * 3     # 768
    H_DIM = 64                   # h_dim*2 = 128, int(h_dim*1.5) = 96
    Z_DIM = 32
    NUSERS = 16
    BATCH = 16
    BATCH_TILE = 8               # exercises the "parallel" batch grid axis

    root = jax.random.PRNGKey(0)
    kp, ki, ku, ke = jax.random.split(root, 4)

    params = init_vae_params(kp, IMAGE_SIZE, H_DIM, Z_DIM, NUSERS)
    imgs = jax.random.uniform(ki, (BATCH, IMAGE_SIZE), jnp.float32)
    uids = jax.random.randint(ku, (BATCH,), 0, NUSERS, dtype=jnp.int32)
    eps = jax.random.normal(ke, (BATCH, Z_DIM), jnp.float32)  # torch.randn

    fwd = jax.jit(functools.partial(vae_forward, batch_tile=BATCH_TILE))
    out = fwd(params, imgs, uids, eps)
    jax.block_until_ready(out)
    reconimgs, usz, pratings, mu, log_var = out

    # Structural checks
    assert reconimgs.shape == (BATCH, IMAGE_SIZE)
    assert usz.shape == (BATCH, Z_DIM)
    assert pratings.shape == (BATCH,)
    assert mu.shape == (BATCH, Z_DIM) and log_var.shape == (BATCH, Z_DIM)
    assert bool(jnp.all((reconimgs >= 0.0) & (reconimgs <= 1.0)))
    assert bool(jnp.all(jnp.isfinite(reconimgs)))

    # Numerical check vs same-precision JAX reference
    r_recon, r_usz, r_pr, r_mu, r_lv = _ref_forward(params, imgs, uids, eps)
    assert bool(jnp.allclose(reconimgs, r_recon, atol=2e-2, rtol=2e-2))
    assert bool(jnp.allclose(usz, r_usz, atol=1e-5, rtol=1e-5))
    assert bool(jnp.allclose(pratings, r_pr, atol=2e-2, rtol=2e-2))
    assert bool(jnp.allclose(mu, r_mu, atol=2e-2, rtol=2e-2))
    assert bool(jnp.allclose(log_var, r_lv, atol=2e-2, rtol=2e-2))

    print("KERNEL_OK")
</pallas_src>

<mosaic_0001>
module attributes {stable_mosaic.version = 11 : i64} {
  func.func @_vae_fused_kernel(%arg0: i32, %arg1: memref<8x768xf32, #tpu.memory_space<vmem>>, %arg2: memref<8x32xf32, #tpu.memory_space<vmem>>, %arg3: memref<8x32xf32, #tpu.memory_space<vmem>>, %arg4: memref<768x128xbf16, #tpu.memory_space<vmem>>, %arg5: memref<1x128xf32, #tpu.memory_space<vmem>>, %arg6: memref<128x96xbf16, #tpu.memory_space<vmem>>, %arg7: memref<1x96xf32, #tpu.memory_space<vmem>>, %arg8: memref<96x64xbf16, #tpu.memory_space<vmem>>, %arg9: memref<1x64xf32, #tpu.memory_space<vmem>>, %arg10: memref<64x64xbf16, #tpu.memory_space<vmem>>, %arg11: memref<1x64xf32, #tpu.memory_space<vmem>>, %arg12: memref<32x64xbf16, #tpu.memory_space<vmem>>, %arg13: memref<1x64xf32, #tpu.memory_space<vmem>>, %arg14: memref<64x96xbf16, #tpu.memory_space<vmem>>, %arg15: memref<1x96xf32, #tpu.memory_space<vmem>>, %arg16: memref<96x128xbf16, #tpu.memory_space<vmem>>, %arg17: memref<1x128xf32, #tpu.memory_space<vmem>>, %arg18: memref<128x768xbf16, #tpu.memory_space<vmem>>, %arg19: memref<1x768xf32, #tpu.memory_space<vmem>>, %arg20: memref<8x768xf32, #tpu.memory_space<vmem>>, %arg21: memref<8x128xf32, #tpu.memory_space<vmem>>, %arg22: memref<8x32xf32, #tpu.memory_space<vmem>>, %arg23: memref<8x32xf32, #tpu.memory_space<vmem>>) attributes {dimension_semantics = [#tpu.dimension_semantics<parallel>], iteration_bounds = array<i64: 2>, scalar_prefetch = 0 : i64, scratch_operands = 0 : i64, tpu.core_type = #tpu.core_type<tc>, window_params = [{transform_indices = @transform_0, window_bounds = array<i64: 8, 768>}, {transform_indices = @transform_1, window_bounds = array<i64: 8, 32>}, {transform_indices = @transform_2, window_bounds = array<i64: 8, 32>}, {pipeline_mode = #tpu.pipeline_mode<synchronous>, transform_indices = @transform_3, window_bounds = array<i64: 768, 128>}, {pipeline_mode = #tpu.pipeline_mode<synchronous>, transform_indices = @transform_4, window_bounds = array<i64: 1, 128>}, {pipeline_mode = #tpu.pipeline_mode<synchronous>, transform_indices = @transform_5, window_bounds = array<i64: 128, 96>}, {pipeline_mode = #tpu.pipeline_mode<synchronous>, transform_indices = @transform_6, window_bounds = array<i64: 1, 96>}, {pipeline_mode = #tpu.pipeline_mode<synchronous>, transform_indices = @transform_7, window_bounds = array<i64: 96, 64>}, {pipeline_mode = #tpu.pipeline_mode<synchronous>, transform_indices = @transform_8, window_bounds = array<i64: 1, 64>}, {pipeline_mode = #tpu.pipeline_mode<synchronous>, transform_indices = @transform_9, window_bounds = array<i64: 64, 64>}, {pipeline_mode = #tpu.pipeline_mode<synchronous>, transform_indices = @transform_10, window_bounds = array<i64: 1, 64>}, {pipeline_mode = #tpu.pipeline_mode<synchronous>, transform_indices = @transform_11, window_bounds = array<i64: 32, 64>}, {pipeline_mode = #tpu.pipeline_mode<synchronous>, transform_indices = @transform_12, window_bounds = array<i64: 1, 64>}, {pipeline_mode = #tpu.pipeline_mode<synchronous>, transform_indices = @transform_13, window_bounds = array<i64: 64, 96>}, {pipeline_mode = #tpu.pipeline_mode<synchronous>, transform_indices = @transform_14, window_bounds = array<i64: 1, 96>}, {pipeline_mode = #tpu.pipeline_mode<synchronous>, transform_indices = @transform_15, window_bounds = array<i64: 96, 128>}, {pipeline_mode = #tpu.pipeline_mode<synchronous>, transform_indices = @transform_16, window_bounds = array<i64: 1, 128>}, {pipeline_mode = #tpu.pipeline_mode<synchronous>, transform_indices = @transform_17, window_bounds = array<i64: 128, 768>}, {pipeline_mode = #tpu.pipeline_mode<synchronous>, transform_indices = @transform_18, window_bounds = array<i64: 1, 768>}, {transform_indices = @transform_19, window_bounds = array<i64: 8, 768>}, {transform_indices = @transform_20, window_bounds = array<i64: 8, 128>}, {transform_indices = @transform_21, window_bounds = array<i64: 8, 32>}, {transform_indices = @transform_22, window_bounds = array<i64: 8, 32>}]} {
    %c0 = arith.constant 0 : index
    %c0_0 = arith.constant 0 : index
    %0 = vector.load %arg1[%c0, %c0_0] : memref<8x768xf32, #tpu.memory_space<vmem>>, vector<8x768xf32>
    %1 = arith.truncf %0 : vector<8x768xf32> to vector<8x768xbf16>
    %c0_1 = arith.constant 0 : index
    %c0_2 = arith.constant 0 : index
    %2 = vector.load %arg4[%c0_1, %c0_2] : memref<768x128xbf16, #tpu.memory_space<vmem>>, vector<768x128xbf16>
    %cst = arith.constant dense<0.000000e+00> : vector<8x128xf32>
    %3 = tpu.matmul %1, %2, %cst {dimension_numbers = #tpu.dot_dimension_numbers<[1], [0], [0], [1], [0, 0, 1, 1], [], []>} : vector<8x768xbf16>, vector<768x128xbf16>, vector<8x128xf32> -> vector<8x128xf32>
    %c0_3 = arith.constant 0 : index
    %c0_4 = arith.constant 0 : index
    %4 = vector.load %arg5[%c0_3, %c0_4] : memref<1x128xf32, #tpu.memory_space<vmem>>, vector<1x128xf32>
    %5 = vector.broadcast %4 : vector<1x128xf32> to vector<8x128xf32>
    %6 = arith.addf %3, %5 : vector<8x128xf32>
    %cst_5 = arith.constant 0.000000e+00 : f32
    %7 = vector.broadcast %cst_5 : f32 to vector<8x128xf32>
    %8 = arith.maximumf %6, %7 : vector<8x128xf32>
    %9 = arith.truncf %8 : vector<8x128xf32> to vector<8x128xbf16>
    %c0_6 = arith.constant 0 : index
    %c0_7 = arith.constant 0 : index
    %10 = vector.load %arg6[%c0_6, %c0_7] : memref<128x96xbf16, #tpu.memory_space<vmem>>, vector<128x96xbf16>
    %cst_8 = arith.constant dense<0.000000e+00> : vector<8x96xf32>
    %11 = tpu.matmul %9, %10, %cst_8 {dimension_numbers = #tpu.dot_dimension_numbers<[1], [0], [0], [1], [0, 0, 1, 1], [], []>} : vector<8x128xbf16>, vector<128x96xbf16>, vector<8x96xf32> -> vector<8x96xf32>
    %c0_9 = arith.constant 0 : index
    %c0_10 = arith.constant 0 : index
    %12 = vector.load %arg7[%c0_9, %c0_10] : memref<1x96xf32, #tpu.memory_space<vmem>>, vector<1x96xf32>
    %13 = vector.broadcast %12 : vector<1x96xf32> to vector<8x96xf32>
    %14 = arith.addf %11, %13 : vector<8x96xf32>
    %cst_11 = arith.constant 0.000000e+00 : f32
    %15 = vector.broadcast %cst_11 : f32 to vector<8x96xf32>
    %16 = arith.maximumf %14, %15 : vector<8x96xf32>
    %17 = arith.truncf %16 : vector<8x96xf32> to vector<8x96xbf16>
    %c0_12 = arith.constant 0 : index
    %c0_13 = arith.constant 0 : index
    %18 = vector.load %arg8[%c0_12, %c0_13] : memref<96x64xbf16, #tpu.memory_space<vmem>>, vector<96x64xbf16>
    %cst_14 = arith.constant dense<0.000000e+00> : vector<8x64xf32>
    %19 = tpu.matmul %17, %18, %cst_14 {dimension_numbers = #tpu.dot_dimension_numbers<[1], [0], [0], [1], [0, 0, 1, 1], [], []>} : vector<8x96xbf16>, vector<96x64xbf16>, vector<8x64xf32> -> vector<8x64xf32>
    %c0_15 = arith.constant 0 : index
    %c0_16 = arith.constant 0 : index
    %20 = vector.load %arg9[%c0_15, %c0_16] : memref<1x64xf32, #tpu.memory_space<vmem>>, vector<1x64xf32>
    %21 = vector.broadcast %20 : vector<1x64xf32> to vector<8x64xf32>
    %22 = arith.addf %19, %21 : vector<8x64xf32>
    %cst_17 = arith.constant 0.000000e+00 : f32
    %23 = vector.broadcast %cst_17 : f32 to vector<8x64xf32>
    %24 = arith.maximumf %22, %23 : vector<8x64xf32>
    %25 = arith.truncf %24 : vector<8x64xf32> to vector<8x64xbf16>
    %c0_18 = arith.constant 0 : index
    %c0_19 = arith.constant 0 : index
    %26 = vector.load %arg10[%c0_18, %c0_19] : memref<64x64xbf16, #tpu.memory_space<vmem>>, vector<64x64xbf16>
    %cst_20 = arith.constant dense<0.000000e+00> : vector<8x64xf32>
    %27 = tpu.matmul %25, %26, %cst_20 {dimension_numbers = #tpu.dot_dimension_numbers<[1], [0], [0], [1], [0, 0, 1, 1], [], []>} : vector<8x64xbf16>, vector<64x64xbf16>, vector<8x64xf32> -> vector<8x64xf32>
    %c0_21 = arith.constant 0 : index
    %c0_22 = arith.constant 0 : index
    %28 = vector.load %arg11[%c0_21, %c0_22] : memref<1x64xf32, #tpu.memory_space<vmem>>, vector<1x64xf32>
    %29 = vector.broadcast %28 : vector<1x64xf32> to vector<8x64xf32>
    %30 = arith.addf %27, %29 : vector<8x64xf32>
    %31 = vector.extract_strided_slice %30 {offsets = [0, 0], sizes = [8, 32], strides = [1, 1]} : vector<8x64xf32> to vector<8x32xf32>
    %32 = vector.extract_strided_slice %30 {offsets = [0, 32], sizes = [8, 32], strides = [1, 1]} : vector<8x64xf32> to vector<8x32xf32>
    %c0_23 = arith.constant 0 : index
    %c0_24 = arith.constant 0 : index
    %33 = vector.load %arg22[%c0_23, %c0_24] : memref<8x32xf32, #tpu.memory_space<vmem>>, vector<8x32xf32>
    tpu.vector_store %arg22[%c0_23, %c0_24], %31 {strides = array<i32>} : memref<8x32xf32, #tpu.memory_space<vmem>>, vector<8x32xf32>,
    %c0_25 = arith.constant 0 : index
    %c0_26 = arith.constant 0 : index
    %34 = vector.load %arg23[%c0_25, %c0_26] : memref<8x32xf32, #tpu.memory_space<vmem>>, vector<8x32xf32>
    tpu.vector_store %arg23[%c0_25, %c0_26], %32 {strides = array<i32>} : memref<8x32xf32, #tpu.memory_space<vmem>>, vector<8x32xf32>,
    %c0_27 = arith.constant 0 : index
    %c0_28 = arith.constant 0 : index
    %35 = vector.load %arg2[%c0_27, %c0_28] : memref<8x32xf32, #tpu.memory_space<vmem>>, vector<8x32xf32>
    %cst_29 = arith.constant 5.000000e-01 : f32
    %36 = vector.broadcast %cst_29 : f32 to vector<8x32xf32>
    %37 = arith.mulf %32, %36 : vector<8x32xf32>
    %38 = math.exp %37 : vector<8x32xf32>
    %39 = arith.mulf %35, %38 : vector<8x32xf32>
    %40 = arith.addf %31, %39 : vector<8x32xf32>
    %c0_30 = arith.constant 0 : index
    %c0_31 = arith.constant 0 : index
    %41 = vector.load %arg3[%c0_30, %c0_31] : memref<8x32xf32, #tpu.memory_space<vmem>>, vector<8x32xf32>
    %42 = arith.mulf %40, %41 : vector<8x32xf32>
    %cst_32 = arith.constant dense<0.000000e+00> : vector<8xf32>
    %43 = vector.multi_reduction <add>, %42, %cst_32 [1] : vector<8x32xf32> to vector<8xf32>
    %44 = vector.shape_cast %43 : vector<8xf32> to vector<8x1xf32>
    %45 = vector.shape_cast %44 : vector<8x1xf32> to vector<8x1xf32>
    %46 = vector.broadcast %45 : vector<8x1xf32> to vector<8x128xf32>
    %c0_33 = arith.constant 0 : index
    %c0_34 = arith.constant 0 : index
    %47 = vector.load %arg21[%c0_33, %c0_34] : memref<8x128xf32, #tpu.memory_space<vmem>>, vector<8x128xf32>
    tpu.vector_store %arg21[%c0_33, %c0_34], %46 {strides = array<i32>} : memref<8x128xf32, #tpu.memory_space<vmem>>, vector<8x128xf32>,
    %48 = arith.truncf %40 : vector<8x32xf32> to vector<8x32xbf16>
    %c0_35 = arith.constant 0 : index
    %c0_36 = arith.constant 0 : index
    %49 = vector.load %arg12[%c0_35, %c0_36] : memref<32x64xbf16, #tpu.memory_space<vmem>>, vector<32x64xbf16>
    %cst_37 = arith.constant dense<0.000000e+00> : vector<8x64xf32>
    %50 = tpu.matmul %48, %49, %cst_37 {dimension_numbers = #tpu.dot_dimension_numbers<[1], [0], [0], [1], [0, 0, 1, 1], [], []>} : vector<8x32xbf16>, vector<32x64xbf16>, vector<8x64xf32> -> vector<8x64xf32>
    %c0_38 = arith.constant 0 : index
    %c0_39 = arith.constant 0 : index
    %51 = vector.load %arg13[%c0_38, %c0_39] : memref<1x64xf32, #tpu.memory_space<vmem>>, vector<1x64xf32>
    %52 = vector.broadcast %51 : vector<1x64xf32> to vector<8x64xf32>
    %53 = arith.addf %50, %52 : vector<8x64xf32>
    %cst_40 = arith.constant 0.000000e+00 : f32
    %54 = vector.broadcast %cst_40 : f32 to vector<8x64xf32>
    %55 = arith.maximumf %53, %54 : vector<8x64xf32>
    %56 = arith.truncf %55 : vector<8x64xf32> to vector<8x64xbf16>
    %c0_41 = arith.constant 0 : index
    %c0_42 = arith.constant 0 : index
    %57 = vector.load %arg14[%c0_41, %c0_42] : memref<64x96xbf16, #tpu.memory_space<vmem>>, vector<64x96xbf16>
    %cst_43 = arith.constant dense<0.000000e+00> : vector<8x96xf32>
    %58 = tpu.matmul %56, %57, %cst_43 {dimension_numbers = #tpu.dot_dimension_numbers<[1], [0], [0], [1], [0, 0, 1, 1], [], []>} : vector<8x64xbf16>, vector<64x96xbf16>, vector<8x96xf32> -> vector<8x96xf32>
    %c0_44 = arith.constant 0 : index
    %c0_45 = arith.constant 0 : index
    %59 = vector.load %arg15[%c0_44, %c0_45] : memref<1x96xf32, #tpu.memory_space<vmem>>, vector<1x96xf32>
    %60 = vector.broadcast %59 : vector<1x96xf32> to vector<8x96xf32>
    %61 = arith.addf %58, %60 : vector<8x96xf32>
    %cst_46 = arith.constant 0.000000e+00 : f32
    %62 = vector.broadcast %cst_46 : f32 to vector<8x96xf32>
    %63 = arith.maximumf %61, %62 : vector<8x96xf32>
    %64 = arith.truncf %63 : vector<8x96xf32> to vector<8x96xbf16>
    %c0_47 = arith.constant 0 : index
    %c0_48 = arith.constant 0 : index
    %65 = vector.load %arg16[%c0_47, %c0_48] : memref<96x128xbf16, #tpu.memory_space<vmem>>, vector<96x128xbf16>
    %cst_49 = arith.constant dense<0.000000e+00> : vector<8x128xf32>
    %66 = tpu.matmul %64, %65, %cst_49 {dimension_numbers = #tpu.dot_dimension_numbers<[1], [0], [0], [1], [0, 0, 1, 1], [], []>} : vector<8x96xbf16>, vector<96x128xbf16>, vector<8x128xf32> -> vector<8x128xf32>
    %c0_50 = arith.constant 0 : index
    %c0_51 = arith.constant 0 : index
    %67 = vector.load %arg17[%c0_50, %c0_51] : memref<1x128xf32, #tpu.memory_space<vmem>>, vector<1x128xf32>
    %68 = vector.broadcast %67 : vector<1x128xf32> to vector<8x128xf32>
    %69 = arith.addf %66, %68 : vector<8x128xf32>
    %cst_52 = arith.constant 0.000000e+00 : f32
    %70 = vector.broadcast %cst_52 : f32 to vector<8x128xf32>
    %71 = arith.maximumf %69, %70 : vector<8x128xf32>
    %72 = arith.truncf %71 : vector<8x128xf32> to vector<8x128xbf16>
    %c0_53 = arith.constant 0 : index
    %c0_54 = arith.constant 0 : index
    %73 = vector.load %arg18[%c0_53, %c0_54] : memref<128x768xbf16, #tpu.memory_space<vmem>>, vector<128x768xbf16>
    %cst_55 = arith.constant dense<0.000000e+00> : vector<8x768xf32>
    %74 = tpu.matmul %72, %73, %cst_55 {dimension_numbers = #tpu.dot_dimension_numbers<[1], [0], [0], [1], [0, 0, 1, 1], [], []>} : vector<8x128xbf16>, vector<128x768xbf16>, vector<8x768xf32> -> vector<8x768xf32>
    %c0_56 = arith.constant 0 : index
    %c0_57 = arith.constant 0 : index
    %75 = vector.load %arg19[%c0_56, %c0_57] : memref<1x768xf32, #tpu.memory_space<vmem>>, vector<1x768xf32>
    %76 = vector.broadcast %75 : vector<1x768xf32> to vector<8x768xf32>
    %77 = arith.addf %74, %76 : vector<8x768xf32>
    %78 = arith.negf %77 : vector<8x768xf32>
    %79 = math.exp %78 : vector<8x768xf32>
    %cst_58 = arith.constant 1.000000e+00 : f32
    %80 = vector.broadcast %cst_58 : f32 to vector<8x768xf32>
    %81 = arith.addf %80, %79 : vector<8x768xf32>
    %82 = arith.divf %80, %81 : vector<8x768xf32>
    %c0_59 = arith.constant 0 : index
    %c0_60 = arith.constant 0 : index
    %83 = vector.load %arg20[%c0_59, %c0_60] : memref<8x768xf32, #tpu.memory_space<vmem>>, vector<8x768xf32>
    tpu.vector_store %arg20[%c0_59, %c0_60], %82 {strides = array<i32>} : memref<8x768xf32, #tpu.memory_space<vmem>>, vector<8x768xf32>,
    return
  }
  func.func @transform_0(%arg0: i32) -> (i32, i32) {
    %c0_i32 = arith.constant 0 : i32
    %c0_i32_0 = arith.constant 0 : i32
    return %arg0, %c0_i32 : i32, i32
  }
  func.func @transform_1(%arg0: i32) -> (i32, i32) {
    %c0_i32 = arith.constant 0 : i32
    %c0_i32_0 = arith.constant 0 : i32
    return %arg0, %c0_i32 : i32, i32
  }
  func.func @transform_2(%arg0: i32) -> (i32, i32) {
    %c0_i32 = arith.constant 0 : i32
    %c0_i32_0 = arith.constant 0 : i32
    return %arg0, %c0_i32 : i32, i32
  }
  func.func @transform_3(%arg0: i32) -> (i32, i32) {
    %c0_i32 = arith.constant 0 : i32
    %c0_i32_0 = arith.constant 0 : i32
    %c0_i32_1 = arith.constant 0 : i32
    return %c0_i32, %c0_i32_0 : i32, i32
  }
  func.func @transform_4(%arg0: i32) -> (i32, i32) {
    %c0_i32 = arith.constant 0 : i32
    %c0_i32_0 = arith.constant 0 : i32
    %c0_i32_1 = arith.constant 0 : i32
    return %c0_i32, %c0_i32_0 : i32, i32
  }
  func.func @transform_5(%arg0: i32) -> (i32, i32) {
    %c0_i32 = arith.constant 0 : i32
    %c0_i32_0 = arith.constant 0 : i32
    %c0_i32_1 = arith.constant 0 : i32
    return %c0_i32, %c0_i32_0 : i32, i32
  }
  func.func @transform_6(%arg0: i32) -> (i32, i32) {
    %c0_i32 = arith.constant 0 : i32
    %c0_i32_0 = arith.constant 0 : i32
    %c0_i32_1 = arith.constant 0 : i32
    return %c0_i32, %c0_i32_0 : i32, i32
  }
  func.func @transform_7(%arg0: i32) -> (i32, i32) {
    %c0_i32 = arith.constant 0 : i32
    %c0_i32_0 = arith.constant 0 : i32
    %c0_i32_1 = arith.constant 0 : i32
    return %c0_i32, %c0_i32_0 : i32, i32
  }
  func.func @transform_8(%arg0: i32) -> (i32, i32) {
    %c0_i32 = arith.constant 0 : i32
    %c0_i32_0 = arith.constant 0 : i32
    %c0_i32_1 = arith.constant 0 : i32
    return %c0_i32, %c0_i32_0 : i32, i32
  }
  func.func @transform_9(%arg0: i32) -> (i32, i32) {
    %c0_i32 = arith.constant 0 : i32
    %c0_i32_0 = arith.constant 0 : i32
    %c0_i32_1 = arith.constant 0 : i32
    return %c0_i32, %c0_i32_0 : i32, i32
  }
  func.func @transform_10(%arg0: i32) -> (i32, i32) {
    %c0_i32 = arith.constant 0 : i32
    %c0_i32_0 = arith.constant 0 : i32
    %c0_i32_1 = arith.constant 0 : i32
    return %c0_i32, %c0_i32_0 : i32, i32
  }
  func.func @transform_11(%arg0: i32) -> (i32, i32) {
    %c0_i32 = arith.constant 0 : i32
    %c0_i32_0 = arith.constant 0 : i32
    %c0_i32_1 = arith.constant 0 : i32
    return %c0_i32, %c0_i32_0 : i32, i32
  }
  func.func @transform_12(%arg0: i32) -> (i32, i32) {
    %c0_i32 = arith.constant 0 : i32
    %c0_i32_0 = arith.constant 0 : i32
    %c0_i32_1 = arith.constant 0 : i32
    return %c0_i32, %c0_i32_0 : i32, i32
  }
  func.func @transform_13(%arg0: i32) -> (i32, i32) {
    %c0_i32 = arith.constant 0 : i32
    %c0_i32_0 = arith.constant 0 : i32
    %c0_i32_1 = arith.constant 0 : i32
    return %c0_i32, %c0_i32_0 : i32, i32
  }
  func.func @transform_14(%arg0: i32) -> (i32, i32) {
    %c0_i32 = arith.constant 0 : i32
    %c0_i32_0 = arith.constant 0 : i32
    %c0_i32_1 = arith.constant 0 : i32
    return %c0_i32, %c0_i32_0 : i32, i32
  }
  func.func @transform_15(%arg0: i32) -> (i32, i32) {
    %c0_i32 = arith.constant 0 : i32
    %c0_i32_0 = arith.constant 0 : i32
    %c0_i32_1 = arith.constant 0 : i32
    return %c0_i32, %c0_i32_0 : i32, i32
  }
  func.func @transform_16(%arg0: i32) -> (i32, i32) {
    %c0_i32 = arith.constant 0 : i32
    %c0_i32_0 = arith.constant 0 : i32
    %c0_i32_1 = arith.constant 0 : i32
    return %c0_i32, %c0_i32_0 : i32, i32
  }
  func.func @transform_17(%arg0: i32) -> (i32, i32) {
    %c0_i32 = arith.constant 0 : i32
    %c0_i32_0 = arith.constant 0 : i32
    %c0_i32_1 = arith.constant 0 : i32
    return %c0_i32, %c0_i32_0 : i32, i32
  }
  func.func @transform_18(%arg0: i32) -> (i32, i32) {
    %c0_i32 = arith.constant 0 : i32
    %c0_i32_0 = arith.constant 0 : i32
    %c0_i32_1 = arith.constant 0 : i32
    return %c0_i32, %c0_i32_0 : i32, i32
  }
  func.func @transform_19(%arg0: i32) -> (i32, i32) {
    %c0_i32 = arith.constant 0 : i32
    %c0_i32_0 = arith.constant 0 : i32
    return %arg0, %c0_i32 : i32, i32
  }
  func.func @transform_20(%arg0: i32) -> (i32, i32) {
    %c0_i32 = arith.constant 0 : i32
    %c0_i32_0 = arith.constant 0 : i32
    return %arg0, %c0_i32 : i32, i32
  }
  func.func @transform_21(%arg0: i32) -> (i32, i32) {
    %c0_i32 = arith.constant 0 : i32
    %c0_i32_0 = arith.constant 0 : i32
    return %arg0, %c0_i32 : i32, i32
  }
  func.func @transform_22(%arg0: i32) -> (i32, i32) {
    %c0_i32 = arith.constant 0 : i32
    %c0_i32_0 = arith.constant 0 : i32
    return %arg0, %c0_i32 : i32, i32
  }
}

</mosaic_0001>

<llo_original>
// kernel: vae_forward.1
$region0: #{vae_forward.1}
  #allocation0 [shape = 'u32[]', space=smem, size = 0x4, offset = 0x4, fixed_abs, tag = 'smem constant byte address 0x4 - core index']
  #allocation1 [shape = 'u32[144,128]{1,0:T(1,128)}', space=vmem, size = 0x12000, scoped, tag = 'internal scratch']
  %s0 = inlined_call_operand.hbm [shape: f32[16,768], index: 0, kind: input, shape index: {}]
  %s1 = inlined_call_operand.vmem [shape: f32[16,32], index: 1, kind: input, shape index: {}]
  %s2 = inlined_call_operand.vmem [shape: f32[16,32], index: 2, kind: input, shape index: {}]
  %s3 = inlined_call_operand.vmem [shape: bf16[768,128], index: 3, kind: input, shape index: {}]
  %s4 = inlined_call_operand.hbm [shape: f32[1,128], index: 4, kind: input, shape index: {}]
  %s5 = inlined_call_operand.vmem [shape: bf16[128,96], index: 5, kind: input, shape index: {}]
  %s6 = inlined_call_operand.vmem [shape: f32[1,96], index: 6, kind: input, shape index: {}]
  %s7 = inlined_call_operand.vmem [shape: bf16[96,64], index: 7, kind: input, shape index: {}]
  %s8 = inlined_call_operand.vmem [shape: f32[1,64], index: 8, kind: input, shape index: {}]
  %s9 = inlined_call_operand.vmem [shape: bf16[64,64], index: 9, kind: input, shape index: {}]
  %s10 = inlined_call_operand.vmem [shape: f32[1,64], index: 10, kind: input, shape index: {}]
  %s11 = inlined_call_operand.hbm [shape: bf16[32,64], index: 11, kind: input, shape index: {}]
  %s12 = inlined_call_operand.hbm [shape: f32[1,64], index: 12, kind: input, shape index: {}]
  %s13 = inlined_call_operand.hbm [shape: bf16[64,96], index: 13, kind: input, shape index: {}]
  %s14 = inlined_call_operand.hbm [shape: f32[1,96], index: 14, kind: input, shape index: {}]
  %s15 = inlined_call_operand.hbm [shape: bf16[96,128], index: 15, kind: input, shape index: {}]
  %s16 = inlined_call_operand.hbm [shape: f32[1,128], index: 16, kind: input, shape index: {}]
  %s17 = inlined_call_operand.hbm [shape: bf16[128,768], index: 17, kind: input, shape index: {}]
  %s18 = inlined_call_operand.hbm [shape: f32[1,768], index: 18, kind: input, shape index: {}]
  %s19 = inlined_call_operand.hbm [shape: f32[16,768], index: 19, kind: output, shape index: {0}]
  %s20 = inlined_call_operand.vmem [shape: f32[16,128], index: 20, kind: output, shape index: {1}]
  %s21 = inlined_call_operand.hbm [shape: f32[16,32], index: 21, kind: output, shape index: {2}]
  %s22 = inlined_call_operand.hbm [shape: f32[16,32], index: 22, kind: output, shape index: {3}]
  %23 = xla_tuple %s19, %s20, %s21, %s22
  %s24 = sld [smem:[#allocation0]]
  $region173: #{vae_forward.1} parent=0
    _
  %s26 = ssub.s32 1, %s24
  %s27 = scalar_select 0, %s26, %s24
  $region1: #{vae_forward.1} parent=0
    #allocation2 [shape = 'u8[49152]{0}', space=vmem, size = 0xc000, scoped, tag = 'input window, operand 0']
    #allocation3 [shape = 's32[2]{0}', space=sflag, size = 0x8, scoped, tag = 'scoped memory for vae_forward.1']
    #allocation4 [shape = 's32[2]{0}', space=sflag, size = 0x8, scoped, tag = 'scoped memory for vae_forward.1']
    #allocation5 [shape = 'u8[512]{0}', space=vmem, size = 0x400, scoped, tag = 'input window, operand 4, single buffered']
    #allocation6 [shape = 's32[1]{0}', space=sflag, size = 0x4, scoped, tag = 'scoped memory for vae_forward.1']
    #allocation7 [shape = 'u8[8192]{0}', space=vmem, size = 0x2000, scoped, tag = 'input window, operand 11, single buffered']
    #allocation8 [shape = 'u8[512]{0}', space=vmem, size = 0x400, scoped, tag = 'input window, operand 12, single buffered']
    #allocation9 [shape = 's32[1]{0}', space=sflag, size = 0x4, scoped, tag = 'scoped memory for vae_forward.1']
    #allocation10 [shape = 'u8[16384]{0}', space=vmem, size = 0x4000, scoped, tag = 'input window, operand 13, single buffered']
    #allocation11 [shape = 'u8[512]{0}', space=vmem, size = 0x400, scoped, tag = 'input window, operand 14, single buffered']
    #allocation12 [shape = 's32[1]{0}', space=sflag, size = 0x4, scoped, tag = 'scoped memory for vae_forward.1']
    #allocation13 [shape = 'u8[24576]{0}', space=vmem, size = 0x6000, scoped, tag = 'input window, operand 15, single buffered']
    #allocation14 [shape = 'u8[512]{0}', space=vmem, size = 0x400, scoped, tag = 'input window, operand 16, single buffered']
    #allocation15 [shape = 's32[1]{0}', space=sflag, size = 0x4, scoped, tag = 'scoped memory for vae_forward.1']
    #allocation16 [shape = 'u8[196608]{0}', space=vmem, size = 0x30000, scoped, tag = 'input window, operand 17, single buffered']
    #allocation17 [shape = 'u8[3072]{0}', space=vmem, size = 0xc00, scoped, tag = 'input window, operand 18, single buffered']
    #allocation18 [shape = 's32[1]{0}', space=sflag, size = 0x4, scoped, tag = 'scoped memory for vae_forward.1']
    #allocation19 [shape = 'u8[49152]{0}', space=vmem, size = 0xc000, scoped, tag = 'output window, operand 0']
    #allocation20 [shape = 'u8[8192]{0}', space=vmem, size = 0x2000, scoped, tag = 'output window, operand 2']
    #allocation21 [shape = 's32[2]{0}', space=sflag, size = 0x8, scoped, tag = 'scoped memory for vae_forward.1']
    #allocation22 [shape = 'u8[8192]{0}', space=vmem, size = 0x2000, scoped, tag = 'output window, operand 3']
    %28 = vsyncpa [#allocation3], 0
    %s29 = scalar_lea.sflag [#allocation3], 1
    %30 = vsyncpa %s29, 0
    %31 = vsyncpa [#allocation6], 0
    %32 = vsyncpa [#allocation9], 0
    %33 = vsyncpa [#allocation12], 0
    %34 = vsyncpa [#allocation15], 0
    %35 = vsyncpa [#allocation18], 0
    %36 = vsyncpa [#allocation4], 0
    %s37 = scalar_lea.sflag [#allocation4], 1
    %38 = vsyncpa %s37, 0
    %39 = vsyncpa [#allocation21], 0
    %s40 = scalar_lea.sflag [#allocation21], 1
    %41 = vsyncpa %s40, 0
    loop: start=0, step=1, limit=4
    $region2: #{vae_forward.1} parent=1 // loop_pre_header
      _
    $region3: #{vae_forward.1} parent=1 // loop_header
      %s43 = sphi 0, %s47
      %p44 = scmp.ge.s32.totalorder %s43, 4
      %s53 = sphi 0, %s55
      %s56 = sphi 0, %s53
      %s57 = sphi 0, %s56
      %s73 = sphi 0, %s57
      %s79 = sphi 0, %s81
      %s82 = sphi 0, %s79
      %s83 = sphi 0, %s82
      %s99 = sphi 0, %s83
      %s105 = sphi 0, %s107
      %s108 = sphi 0, %s105
      %s109 = sphi 0, %s108
      %s125 = sphi 0, %s109
      %s129 = sphi 0, %s129
      %s131 = sphi 0, %s129
      %s132 = sphi 0, %s131
      %s146 = sphi 0, %s132
      %s150 = sphi 0, %s150
      %s152 = sphi 0, %s150
      %s153 = sphi 0, %s152
      %s167 = sphi 0, %s153
      %s171 = sphi 0, %s171
      %s173 = sphi 0, %s171
      %s174 = sphi 0, %s173
      %s188 = sphi 0, %s174
      %s192 = sphi 0, %s192
      %s194 = sphi 0, %s192
      %s195 = sphi 0, %s194
      %s209 = sphi 0, %s195
      %s213 = sphi 0, %s213
      %s215 = sphi 0, %s213
      %s216 = sphi 0, %s215
      %s230 = sphi 0, %s216
      %s234 = sphi 0, %s234
      %s236 = sphi 0, %s234
      %s237 = sphi 0, %s236
      %s251 = sphi 0, %s237
      %s255 = sphi 0, %s255
      %s257 = sphi 0, %s255
      %s258 = sphi 0, %s257
      %s272 = sphi 0, %s258
      %s276 = sphi 0, %s276
      %s278 = sphi 0, %s276
      %s279 = sphi 0, %s278
      %s293 = sphi 0, %s279
      %s297 = sphi 0, %s297
      %s299 = sphi 0, %s297
      %s300 = sphi 0, %s299
      %s314 = sphi 0, %s300
      %s318 = sphi 0, %s318
      %s320 = sphi 0, %s318
      %s321 = sphi 0, %s320
      %s335 = sphi 0, %s321
      %s339 = sphi 0, %s339
      %s341 = sphi 0, %s339
      %s342 = sphi 0, %s341
      %s356 = sphi 0, %s342
      %s360 = sphi 0, %s360
      %s362 = sphi 0, %s360
      %s363 = sphi 0, %s362
      %s377 = sphi 0, %s363
      %s381 = sphi 0, %s381
      %s383 = sphi 0, %s381
      %s384 = sphi 0, %s383
      %s398 = sphi 0, %s384
      %s402 = sphi 0, %s402
      %s404 = sphi 0, %s402
      %s405 = sphi 0, %s404
      %s419 = sphi 0, %s405
      %s423 = sphi 0, %s423
      %s425 = sphi 0, %s423
      %s426 = sphi 0, %s425
      %s440 = sphi 0, %s426
      %s444 = sphi 0, %s444
      %s446 = sphi 0, %s444
      %s447 = sphi 0, %s446
      %s461 = sphi 0, %s447
      %s467 = sphi 0, %s469
      %s470 = sphi 0, %s467
      %s471 = sphi 0, %s470
      %s487 = sphi 0, %s471
      %s493 = sphi 0, %s495
      %s496 = sphi 0, %s493
      %s497 = sphi 0, %s496
      %s513 = sphi 0, %s497
      %s519 = sphi 0, %s521
      %s522 = sphi 0, %s519
      %s523 = sphi 0, %s522
      %s539 = sphi 0, %s523
      %s545 = sphi 0, %s547
      %s548 = sphi 0, %s545
      %s549 = sphi 0, %s548
      %s565 = sphi 0, %s549
    $region4: #{vae_forward.1} parent=1 // loop_header_branch
      %46 = sbr.rel (%p44) target = $region8
    $region5: #{vae_forward.1} parent=1 // loop_body
      %s48 = ssub.s32 %s43, 1
      %s49 = ssub.s32 %s43, 2
      %s50 = sadd.s32 %s43, 1
      %s51 = ssub.s32 %s43, %s50
      %p52 = scmp.eq.s32.totalorder %s51, 0
      %s54 = sadd.s32 %s53, 1
      %s55 = scalar_select %p52, %s53, %s54
      %p58 = pneg %p52
      %p59 = scmp.eq.s32.totalorder %s43, 1
      %p60 = por %p58, %p59
      %p61 = scmp.ne.s32.totalorder %s53, %s56
      %p62 = scmp.eq.s32.totalorder %s43, 0
      %p63 = por %p61, %p62
      %p64 = scmp.ne.s32.totalorder %s53, %s56
      %p65 = scmp.eq.s32.totalorder %s48, 1
      %p66 = por %p64, %p65
      %p67 = scmp.ne.s32.totalorder %s56, %s57
      %p68 = scmp.eq.s32.totalorder %s48, 0
      %p69 = por %p67, %p68
      %p70 = scmp.ne.s32.totalorder %s56, %s57
      %p71 = scmp.eq.s32.totalorder %s49, 1
      %p72 = por %p70, %p71
      %p74 = scmp.ne.s32.totalorder %s57, %s73
      %p75 = scmp.eq.s32.totalorder %s49, 0
      %p76 = por %p74, %p75
      %s77 = ssub.s32 %s43, %s50
      %p78 = scmp.eq.s32.totalorder %s77, 0
      %s80 = sadd.s32 %s79, 1
      %s81 = scalar_select %p78, %s79, %s80
      %p84 = pneg %p78
      %p85 = scmp.eq.s32.totalorder %s43, 1
      %p86 = por %p84, %p85
      %p87 = scmp.ne.s32.totalorder %s79, %s82
      %p88 = scmp.eq.s32.totalorder %s43, 0
      %p89 = por %p87, %p88
      %p90 = scmp.ne.s32.totalorder %s79, %s82
      %p91 = scmp.eq.s32.totalorder %s48, 1
      %p92 = por %p90, %p91
      %p93 = scmp.ne.s32.totalorder %s82, %s83
      %p94 = scmp.eq.s32.totalorder %s48, 0
      %p95 = por %p93, %p94
      %p96 = scmp.ne.s32.totalorder %s82, %s83
      %p97 = scmp.eq.s32.totalorder %s49, 1
      %p98 = por %p96, %p97
      %p100 = scmp.ne.s32.totalorder %s83, %s99
      %p101 = scmp.eq.s32.totalorder %s49, 0
      %p102 = por %p100, %p101
      %s103 = ssub.s32 %s43, %s50
      %p104 = scmp.eq.s32.totalorder %s103, 0
      %s106 = sadd.s32 %s105, 1
      %s107 = scalar_select %p104, %s105, %s106
      %p110 = pneg %p104
      %p111 = scmp.eq.s32.totalorder %s43, 1
      %p112 = por %p110, %p111
      %p113 = scmp.ne.s32.totalorder %s105, %s108
      %p114 = scmp.eq.s32.totalorder %s43, 0
      %p115 = por %p113, %p114
      %p116 = scmp.ne.s32.totalorder %s105, %s108
      %p117 = scmp.eq.s32.totalorder %s48, 1
      %p118 = por %p116, %p117
      %p119 = scmp.ne.s32.totalorder %s108, %s109
      %p120 = scmp.eq.s32.totalorder %s48, 0
      %p121 = por %p119, %p120
      %p122 = scmp.ne.s32.totalorder %s108, %s109
      %p123 = scmp.eq.s32.totalorder %s49, 1
      %p124 = por %p122, %p123
      %p126 = scmp.ne.s32.totalorder %s109, %s125
      %p127 = scmp.eq.s32.totalorder %s49, 0
      %p128 = por %p126, %p127
      %s130 = sadd.s32 %s129, 1
      %p133 = scmp.eq.s32.totalorder %s43, 1
      %p134 = scmp.ne.s32.totalorder %s129, %s131
      %p135 = scmp.eq.s32.totalorder %s43, 0
      %p136 = por %p134, %p135
      %p137 = scmp.ne.s32.totalorder %s129, %s131
      %p138 = scmp.eq.s32.totalorder %s48, 1
      %p139 = por %p137, %p138
      %p140 = scmp.ne.s32.totalorder %s131, %s132
      %p141 = scmp.eq.s32.totalorder %s48, 0
      %p142 = por %p140, %p141
      %p143 = scmp.ne.s32.totalorder %s131, %s132
      %p144 = scmp.eq.s32.totalorder %s49, 1
      %p145 = por %p143, %p144
      %p147 = scmp.ne.s32.totalorder %s132, %s146
      %p148 = scmp.eq.s32.totalorder %s49, 0
      %p149 = por %p147, %p148
      %s151 = sadd.s32 %s150, 1
      %p154 = scmp.eq.s32.totalorder %s43, 1
      %p155 = scmp.ne.s32.totalorder %s150, %s152
      %p156 = scmp.eq.s32.totalorder %s43, 0
      %p157 = por %p155, %p156
      %p158 = scmp.ne.s32.totalorder %s150, %s152
      %p159 = scmp.eq.s32.totalorder %s48, 1
      %p160 = por %p158, %p159
      %p161 = scmp.ne.s32.totalorder %s152, %s153
      %p162 = scmp.eq.s32.totalorder %s48, 0
      %p163 = por %p161, %p162
      %p164 = scmp.ne.s32.totalorder %s152, %s153
      %p165 = scmp.eq.s32.totalorder %s49, 1
      %p166 = por %p164, %p165
      %p168 = scmp.ne.s32.totalorder %s153, %s167
      %p169 = scmp.eq.s32.totalorder %s49, 0
      %p170 = por %p168, %p169
      %s172 = sadd.s32 %s171, 1
      %p175 = scmp.eq.s32.totalorder %s43, 1
      %p176 = scmp.ne.s32.totalorder %s171, %s173
      %p177 = scmp.eq.s32.totalorder %s43, 0
      %p178 = por %p176, %p177
      %p179 = scmp.ne.s32.totalorder %s171, %s173
      %p180 = scmp.eq.s32.totalorder %s48, 1
      %p181 = por %p179, %p180
      %p182 = scmp.ne.s32.totalorder %s173, %s174
      %p183 = scmp.eq.s32.totalorder %s48, 0
      %p184 = por %p182, %p183
      %p185 = scmp.ne.s32.totalorder %s173, %s174
      %p186 = scmp.eq.s32.totalorder %s49, 1
      %p187 = por %p185, %p186
      %p189 = scmp.ne.s32.totalorder %s174, %s188
      %p190 = scmp.eq.s32.totalorder %s49, 0
      %p191 = por %p189, %p190
      %s193 = sadd.s32 %s192, 1
      %p196 = scmp.eq.s32.totalorder %s43, 1
      %p197 = scmp.ne.s32.totalorder %s192, %s194
      %p198 = scmp.eq.s32.totalorder %s43, 0
      %p199 = por %p197, %p198
      %p200 = scmp.ne.s32.totalorder %s192, %s194
      %p201 = scmp.eq.s32.totalorder %s48, 1
      %p202 = por %p200, %p201
      %p203 = scmp.ne.s32.totalorder %s194, %s195
      %p204 = scmp.eq.s32.totalorder %s48, 0
      %p205 = por %p203, %p204
      %p206 = scmp.ne.s32.totalorder %s194, %s195
      %p207 = scmp.eq.s32.totalorder %s49, 1
      %p208 = por %p206, %p207
      %p210 = scmp.ne.s32.totalorder %s195, %s209
      %p211 = scmp.eq.s32.totalorder %s49, 0
      %p212 = por %p210, %p211
      %s214 = sadd.s32 %s213, 1
      %p217 = scmp.eq.s32.totalorder %s43, 1
      %p218 = scmp.ne.s32.totalorder %s213, %s215
      %p219 = scmp.eq.s32.totalorder %s43, 0
      %p220 = por %p218, %p219
      %p221 = scmp.ne.s32.totalorder %s213, %s215
      %p222 = scmp.eq.s32.totalorder %s48, 1
      %p223 = por %p221, %p222
      %p224 = scmp.ne.s32.totalorder %s215, %s216
      %p225 = scmp.eq.s32.totalorder %s48, 0
      %p226 = por %p224, %p225
      %p227 = scmp.ne.s32.totalorder %s215, %s216
      %p228 = scmp.eq.s32.totalorder %s49, 1
      %p229 = por %p227, %p228
      %p231 = scmp.ne.s32.totalorder %s216, %s230
      %p232 = scmp.eq.s32.totalorder %s49, 0
      %p233 = por %p231, %p232
      %s235 = sadd.s32 %s234, 1
      %p238 = scmp.eq.s32.totalorder %s43, 1
      %p239 = scmp.ne.s32.totalorder %s234, %s236
      %p240 = scmp.eq.s32.totalorder %s43, 0
      %p241 = por %p239, %p240
      %p242 = scmp.ne.s32.totalorder %s234, %s236
      %p243 = scmp.eq.s32.totalorder %s48, 1
      %p244 = por %p242, %p243
      %p245 = scmp.ne.s32.totalorder %s236, %s237
      %p246 = scmp.eq.s32.totalorder %s48, 0
      %p247 = por %p245, %p246
      %p248 = scmp.ne.s32.totalorder %s236, %s237
      %p249 = scmp.eq.s32.totalorder %s49, 1
      %p250 = por %p248, %p249
      %p252 = scmp.ne.s32.totalorder %s237, %s251
      %p253 = scmp.eq.s32.totalorder %s49, 0
      %p254 = por %p252, %p253
      %s256 = sadd.s32 %s255, 1
      %p259 = scmp.eq.s32.totalorder %s43, 1
      %p260 = scmp.ne.s32.totalorder %s255, %s257
      %p261 = scmp.eq.s32.totalorder %s43, 0
      %p262 = por %p260, %p261
      %p263 = scmp.ne.s32.totalorder %s255, %s257
      %p264 = scmp.eq.s32.totalorder %s48, 1
      %p265 = por %p263, %p264
      %p266 = scmp.ne.s32.totalorder %s257, %s258
      %p267 = scmp.eq.s32.totalorder %s48, 0
      %p268 = por %p266, %p267
      %p269 = scmp.ne.s32.totalorder %s257, %s258
      %p270 = scmp.eq.s32.totalorder %s49, 1
      %p271 = por %p269, %p270
      %p273 = scmp.ne.s32.totalorder %s258, %s272
      %p274 = scmp.eq.s32.totalorder %s49, 0
      %p275 = por %p273, %p274
      %s277 = sadd.s32 %s276, 1
      %p280 = scmp.eq.s32.totalorder %s43, 1
      %p281 = scmp.ne.s32.totalorder %s276, %s278
      %p282 = scmp.eq.s32.totalorder %s43, 0
      %p283 = por %p281, %p282
      %p284 = scmp.ne.s32.totalorder %s276, %s278
      %p285 = scmp.eq.s32.totalorder %s48, 1
      %p286 = por %p284, %p285
      %p287 = scmp.ne.s32.totalorder %s278, %s279
      %p288 = scmp.eq.s32.totalorder %s48, 0
      %p289 = por %p287, %p288
      %p290 = scmp.ne.s32.totalorder %s278, %s279
      %p291 = scmp.eq.s32.totalorder %s49, 1
      %p292 = por %p290, %p291
      %p294 = scmp.ne.s32.totalorder %s279, %s293
      %p295 = scmp.eq.s32.totalorder %s49, 0
      %p296 = por %p294, %p295
      %s298 = sadd.s32 %s297, 1
      %p301 = scmp.eq.s32.totalorder %s43, 1
      %p302 = scmp.ne.s32.totalorder %s297, %s299
      %p303 = scmp.eq.s32.totalorder %s43, 0
      %p304 = por %p302, %p303
      %p305 = scmp.ne.s32.totalorder %s297, %s299
      %p306 = scmp.eq.s32.totalorder %s48, 1
      %p307 = por %p305, %p306
      %p308 = scmp.ne.s32.totalorder %s299, %s300
      %p309 = scmp.eq.s32.totalorder %s48, 0
      %p310 = por %p308, %p309
      %p311 = scmp.ne.s32.totalorder %s299, %s300
      %p312 = scmp.eq.s32.totalorder %s49, 1
      %p313 = por %p311, %p312
      %p315 = scmp.ne.s32.totalorder %s300, %s314
      %p316 = scmp.eq.s32.totalorder %s49, 0
      %p317 = por %p315, %p316
      %s319 = sadd.s32 %s318, 1
      %p322 = scmp.eq.s32.totalorder %s43, 1
      %p323 = scmp.ne.s32.totalorder %s318, %s320
      %p324 = scmp.eq.s32.totalorder %s43, 0
      %p325 = por %p323, %p324
      %p326 = scmp.ne.s32.totalorder %s318, %s320
      %p327 = scmp.eq.s32.totalorder %s48, 1
      %p328 = por %p326, %p327
      %p329 = scmp.ne.s32.totalorder %s320, %s321
      %p330 = scmp.eq.s32.totalorder %s48, 0
      %p331 = por %p329, %p330
      %p332 = scmp.ne.s32.totalorder %s320, %s321
      %p333 = scmp.eq.s32.totalorder %s49, 1
      %p334 = por %p332, %p333
      %p336 = scmp.ne.s32.totalorder %s321, %s335
      %p337 = scmp.eq.s32.totalorder %s49, 0
      %p338 = por %p336, %p337
      %s340 = sadd.s32 %s339, 1
      %p343 = scmp.eq.s32.totalorder %s43, 1
      %p344 = scmp.ne.s32.totalorder %s339, %s341
      %p345 = scmp.eq.s32.totalorder %s43, 0
      %p346 = por %p344, %p345
      %p347 = scmp.ne.s32.totalorder %s339, %s341
      %p348 = scmp.eq.s32.totalorder %s48, 1
      %p349 = por %p347, %p348
      %p350 = scmp.ne.s32.totalorder %s341, %s342
      %p351 = scmp.eq.s32.totalorder %s48, 0
      %p352 = por %p350, %p351
      %p353 = scmp.ne.s32.totalorder %s341, %s342
      %p354 = scmp.eq.s32.totalorder %s49, 1
      %p355 = por %p353, %p354
      %p357 = scmp.ne.s32.totalorder %s342, %s356
      %p358 = scmp.eq.s32.totalorder %s49, 0
      %p359 = por %p357, %p358
      %s361 = sadd.s32 %s360, 1
      %p364 = scmp.eq.s32.totalorder %s43, 1
      %p365 = scmp.ne.s32.totalorder %s360, %s362
      %p366 = scmp.eq.s32.totalorder %s43, 0
      %p367 = por %p365, %p366
      %p368 = scmp.ne.s32.totalorder %s360, %s362
      %p369 = scmp.eq.s32.totalorder %s48, 1
      %p370 = por %p368, %p369
      %p371 = scmp.ne.s32.totalorder %s362, %s363
      %p372 = scmp.eq.s32.totalorder %s48, 0
      %p373 = por %p371, %p372
      %p374 = scmp.ne.s32.totalorder %s362, %s363
      %p375 = scmp.eq.s32.totalorder %s49, 1
      %p376 = por %p374, %p375
      %p378 = scmp.ne.s32.totalorder %s363, %s377
      %p379 = scmp.eq.s32.totalorder %s49, 0
      %p380 = por %p378, %p379
      %s382 = sadd.s32 %s381, 1
      %p385 = scmp.eq.s32.totalorder %s43, 1
      %p386 = scmp.ne.s32.totalorder %s381, %s383
      %p387 = scmp.eq.s32.totalorder %s43, 0
      %p388 = por %p386, %p387
      %p389 = scmp.ne.s32.totalorder %s381, %s383
      %p390 = scmp.eq.s32.totalorder %s48, 1
      %p391 = por %p389, %p390
      %p392 = scmp.ne.s32.totalorder %s383, %s384
      %p393 = scmp.eq.s32.totalorder %s48, 0
      %p394 = por %p392, %p393
      %p395 = scmp.ne.s32.totalorder %s383, %s384
      %p396 = scmp.eq.s32.totalorder %s49, 1
      %p397 = por %p395, %p396
      %p399 = scmp.ne.s32.totalorder %s384, %s398
      %p400 = scmp.eq.s32.totalorder %s49, 0
      %p401 = por %p399, %p400
      %s403 = sadd.s32 %s402, 1
      %p406 = scmp.eq.s32.totalorder %s43, 1
      %p407 = scmp.ne.s32.totalorder %s402, %s404
      %p408 = scmp.eq.s32.totalorder %s43, 0
      %p409 = por %p407, %p408
      %p410 = scmp.ne.s32.totalorder %s402, %s404
      %p411 = scmp.eq.s32.totalorder %s48, 1
      %p412 = por %p410, %p411
      %p413 = scmp.ne.s32.totalorder %s404, %s405
      %p414 = scmp.eq.s32.totalorder %s48, 0
      %p415 = por %p413, %p414
      %p416 = scmp.ne.s32.totalorder %s404, %s405
      %p417 = scmp.eq.s32.totalorder %s49, 1
      %p418 = por %p416, %p417
      %p420 = scmp.ne.s32.totalorder %s405, %s419
      %p421 = scmp.eq.s32.totalorder %s49, 0
      %p422 = por %p420, %p421
      %s424 = sadd.s32 %s423, 1
      %p427 = scmp.eq.s32.totalorder %s43, 1
      %p428 = scmp.ne.s32.totalorder %s423, %s425
      %p429 = scmp.eq.s32.totalorder %s43, 0
      %p430 = por %p428, %p429
      %p431 = scmp.ne.s32.totalorder %s423, %s425
      %p432 = scmp.eq.s32.totalorder %s48, 1
      %p433 = por %p431, %p432
      %p434 = scmp.ne.s32.totalorder %s425, %s426
      %p435 = scmp.eq.s32.totalorder %s48, 0
      %p436 = por %p434, %p435
      %p437 = scmp.ne.s32.totalorder %s425, %s426
      %p438 = scmp.eq.s32.totalorder %s49, 1
      %p439 = por %p437, %p438
      %p441 = scmp.ne.s32.totalorder %s426, %s440
      %p442 = scmp.eq.s32.totalorder %s49, 0
      %p443 = por %p441, %p442
      %s445 = sadd.s32 %s444, 1
      %p448 = scmp.eq.s32.totalorder %s43, 1
      %p449 = scmp.ne.s32.totalorder %s444, %s446
      %p450 = scmp.eq.s32.totalorder %s43, 0
      %p451 = por %p449, %p450
      %p452 = scmp.ne.s32.totalorder %s444, %s446
      %p453 = scmp.eq.s32.totalorder %s48, 1
      %p454 = por %p452, %p453
      %p455 = scmp.ne.s32.totalorder %s446, %s447
      %p456 = scmp.eq.s32.totalorder %s48, 0
      %p457 = por %p455, %p456
      %p458 = scmp.ne.s32.totalorder %s446, %s447
      %p459 = scmp.eq.s32.totalorder %s49, 1
      %p460 = por %p458, %p459
      %p462 = scmp.ne.s32.totalorder %s447, %s461
      %p463 = scmp.eq.s32.totalorder %s49, 0
      %p464 = por %p462, %p463
      %s465 = ssub.s32 %s43, %s50
      %p466 = scmp.eq.s32.totalorder %s465, 0
      %s468 = sadd.s32 %s467, 1
      %s469 = scalar_select %p466, %s467, %s468
      %p472 = pneg %p466
      %p473 = scmp.eq.s32.totalorder %s43, 1
      %p474 = por %p472, %p473
      %p475 = scmp.ne.s32.totalorder %s467, %s470
      %p476 = scmp.eq.s32.totalorder %s43, 0
      %p477 = por %p475, %p476
      %p478 = scmp.ne.s32.totalorder %s467, %s470
      %p479 = scmp.eq.s32.totalorder %s48, 1
      %p480 = por %p478, %p479
      %p481 = scmp.ne.s32.totalorder %s470, %s471
      %p482 = scmp.eq.s32.totalorder %s48, 0
      %p483 = por %p481, %p482
      %p484 = scmp.ne.s32.totalorder %s470, %s471
      %p485 = scmp.eq.s32.totalorder %s49, 1
      %p486 = por %p484, %p485
      %p488 = scmp.ne.s32.totalorder %s471, %s487
      %p489 = scmp.eq.s32.totalorder %s49, 0
      %p490 = por %p488, %p489
      %s491 = ssub.s32 %s43, %s50
      %p492 = scmp.eq.s32.totalorder %s491, 0
      %s494 = sadd.s32 %s493, 1
      %s495 = scalar_select %p492, %s493, %s494
      %p498 = pneg %p492
      %p499 = scmp.eq.s32.totalorder %s43, 1
      %p500 = por %p498, %p499
      %p501 = scmp.ne.s32.totalorder %s493, %s496
      %p502 = scmp.eq.s32.totalorder %s43, 0
      %p503 = por %p501, %p502
      %p504 = scmp.ne.s32.totalorder %s493, %s496
      %p505 = scmp.eq.s32.totalorder %s48, 1
      %p506 = por %p504, %p505
      %p507 = scmp.ne.s32.totalorder %s496, %s497
      %p508 = scmp.eq.s32.totalorder %s48, 0
      %p509 = por %p507, %p508
      %p510 = scmp.ne.s32.totalorder %s496, %s497
      %p511 = scmp.eq.s32.totalorder %s49, 1
      %p512 = por %p510, %p511
      %p514 = scmp.ne.s32.totalorder %s497, %s513
      %p515 = scmp.eq.s32.totalorder %s49, 0
      %p516 = por %p514, %p515
      %s517 = ssub.s32 %s43, %s50
      %p518 = scmp.eq.s32.totalorder %s517, 0
      %s520 = sadd.s32 %s519, 1
      %s521 = scalar_select %p518, %s519, %s520
      %p524 = pneg %p518
      %p525 = scmp.eq.s32.totalorder %s43, 1
      %p526 = por %p524, %p525
      %p527 = scmp.ne.s32.totalorder %s519, %s522
      %p528 = scmp.eq.s32.totalorder %s43, 0
      %p529 = por %p527, %p528
      %p530 = scmp.ne.s32.totalorder %s519, %s522
      %p531 = scmp.eq.s32.totalorder %s48, 1
      %p532 = por %p530, %p531
      %p533 = scmp.ne.s32.totalorder %s522, %s523
      %p534 = scmp.eq.s32.totalorder %s48, 0
      %p535 = por %p533, %p534
      %p536 = scmp.ne.s32.totalorder %s522, %s523
      %p537 = scmp.eq.s32.totalorder %s49, 1
      %p538 = por %p536, %p537
      %p540 = scmp.ne.s32.totalorder %s523, %s539
      %p541 = scmp.eq.s32.totalorder %s49, 0
      %p542 = por %p540, %p541
      %s543 = ssub.s32 %s43, %s50
      %p544 = scmp.eq.s32.totalorder %s543, 0
      %s546 = sadd.s32 %s545, 1
      %s547 = scalar_select %p544, %s545, %s546
      %p550 = pneg %p544
      %p551 = scmp.eq.s32.totalorder %s43, 1
      %p552 = por %p550, %p551
      %p553 = scmp.ne.s32.totalorder %s545, %s548
      %p554 = scmp.eq.s32.totalorder %s43, 0
      %p555 = por %p553, %p554
      %p556 = scmp.ne.s32.totalorder %s545, %s548
      %p557 = scmp.eq.s32.totalorder %s48, 1
      %p558 = por %p556, %p557
      %p559 = scmp.ne.s32.totalorder %s548, %s549
      %p560 = scmp.eq.s32.totalorder %s48, 0
      %p561 = por %p559, %p560
      %p562 = scmp.ne.s32.totalorder %s548, %s549
      %p563 = scmp.eq.s32.totalorder %s49, 1
      %p564 = por %p562, %p563
      %p566 = scmp.ne.s32.totalorder %s549, %s565
      %p567 = scmp.eq.s32.totalorder %s49, 0
      %p568 = por %p566, %p567
      %p569 = scmp.le.s32.totalorder 1, %s43
      %p570 = scmp.lt.s32.totalorder %s43, 3
      %p571 = pnand %p569, %p570
      %p572 = pneg %p571
      // Predicated region
      $region9: #{vae_forward.1} parent=5 // pred_check
        _
      $region10: #{vae_forward.1} parent=5 // pred_check_branch
        %574 = sbr.rel (%p571) target = $region12
      $region11: #{vae_forward.1} parent=5 // pred_region
        %s575 = ssub.s32 %s43, 1
        // Predicated region
        $region13: #{vae_forward.1} parent=11 // pred_check
          %p576 = pneg %p142
        $region14: #{vae_forward.1} parent=11 // pred_check_branch
          %578 = sbr.rel (%p576) target = $region16
        $region15: #{vae_forward.1} parent=11 // pred_region
          _
        $region16: #{vae_forward.1} parent=11 // pred_fallthru
          _
        // Predicated region
        $region17: #{vae_forward.1} parent=11 // pred_check
          %p579 = pneg %p163
        $region18: #{vae_forward.1} parent=11 // pred_check_branch
          %581 = sbr.rel (%p579) target = $region20
        $region19: #{vae_forward.1} parent=11 // pred_region
          %s583 = ssub.s32 16, 16
          %584 = vsyncadd [#allocation6], %s583
          %s586 = sshll.u32 [#allocation5], 4
          %s587 = int_to_ptr.vmem [resolvable:$true] %s586
          %589 = dma.hbm_to_vmem [thread:$0]  %s4, 16, %s587, [#allocation6]
        $region20: #{vae_forward.1} parent=11 // pred_fallthru
          _
        // Predicated region
        $region21: #{vae_forward.1} parent=11 // pred_check
          %p590 = pneg %p184
        $region22: #{vae_forward.1} parent=11 // pred_check_branch
          %592 = sbr.rel (%p590) target = $region24
        $region23: #{vae_forward.1} parent=11 // pred_region
          _
        $region24: #{vae_forward.1} parent=11 // pred_fallthru
          _
        // Predicated region
        $region25: #{vae_forward.1} parent=11 // pred_check
          %p593 = pneg %p205
        $region26: #{vae_forward.1} parent=11 // pred_check_branch
          %595 = sbr.rel (%p593) target = $region28
        $region27: #{vae_forward.1} parent=11 // pred_region
          _
        $region28: #{vae_forward.1} parent=11 // pred_fallthru
          _
        // Predicated region
        $region29: #{vae_forward.1} parent=11 // pred_check
          %p596 = pneg %p226
        $region30: #{vae_forward.1} parent=11 // pred_check_branch
          %598 = sbr.rel (%p596) target = $region32
        $region31: #{vae_forward.1} parent=11 // pred_region
          _
        $region32: #{vae_forward.1} parent=11 // pred_fallthru
          _
        // Predicated region
        $region33: #{vae_forward.1} parent=11 // pred_check
          %p599 = pneg %p247
        $region34: #{vae_forward.1} parent=11 // pred_check_branch
          %601 = sbr.rel (%p599) target = $region36
        $region35: #{vae_forward.1} parent=11 // pred_region
          _
        $region36: #{vae_forward.1} parent=11 // pred_fallthru
          _
        // Predicated region
        $region37: #{vae_forward.1} parent=11 // pred_check
          %p602 = pneg %p268
        $region38: #{vae_forward.1} parent=11 // pred_check_branch
          %604 = sbr.rel (%p602) target = $region40
        $region39: #{vae_forward.1} parent=11 // pred_region
          _
        $region40: #{vae_forward.1} parent=11 // pred_fallthru
          _
        // Predicated region
        $region41: #{vae_forward.1} parent=11 // pred_check
          %p605 = pneg %p289
        $region42: #{vae_forward.1} parent=11 // pred_check_branch
          %607 = sbr.rel (%p605) target = $region44
        $region43: #{vae_forward.1} parent=11 // pred_region
          _
        $region44: #{vae_forward.1} parent=11 // pred_fallthru
          _
        // Predicated region
        $region45: #{vae_forward.1} parent=11 // pred_check
          %p608 = pneg %p310
        $region46: #{vae_forward.1} parent=11 // pred_check_branch
          %610 = sbr.rel (%p608) target = $region48
        $region47: #{vae_forward.1} parent=11 // pred_region
          %s612 = ssub.s32 256, 256
          %613 = vsyncadd [#allocation6], %s612
          %s614 = sshll.u32 [#allocation7], 4
          %s615 = int_to_ptr.vmem [resolvable:$true] %s614
          %620 = dma.hbm_to_vmem [thread:$0]  %s11, 256, %s615, [#allocation6], 64, 64, 4
        $region48: #{vae_forward.1} parent=11 // pred_fallthru
          _
        // Predicated region
        $region49: #{vae_forward.1} parent=11 // pred_check
          %p621 = pneg %p331
        $region50: #{vae_forward.1} parent=11 // pred_check_branch
          %623 = sbr.rel (%p621) target = $region52
        $region51: #{vae_forward.1} parent=11 // pred_region
          %s625 = ssub.s32 16, 16
          %626 = vsyncadd [#allocation9], %s625
          %s628 = sshll.u32 [#allocation8], 4
          %s629 = int_to_ptr.vmem [resolvable:$true] %s628
          %631 = dma.hbm_to_vmem [thread:$0]  %s12, 16, %s629, [#allocation9]
        $region52: #{vae_forward.1} parent=11 // pred_fallthru
          _
        // Predicated region
        $region53: #{vae_forward.1} parent=11 // pred_check
          %p632 = pneg %p352
        $region54: #{vae_forward.1} parent=11 // pred_check_branch
          %634 = sbr.rel (%p632) target = $region56
        $region55: #{vae_forward.1} parent=11 // pred_region
          %s636 = ssub.s32 512, 512
          %637 = vsyncadd [#allocation9], %s636
          %s638 = sshll.u32 [#allocation10], 4
          %s639 = int_to_ptr.vmem [resolvable:$true] %s638
          %644 = dma.hbm_to_vmem [thread:$0]  %s13, 512, %s639, [#allocation9], 64, 64, 4
        $region56: #{vae_forward.1} parent=11 // pred_fallthru
          _
        // Predicated region
        $region57: #{vae_forward.1} parent=11 // pred_check
          %p645 = pneg %p373
        $region58: #{vae_forward.1} parent=11 // pred_check_branch
          %647 = sbr.rel (%p645) target = $region60
        $region59: #{vae_forward.1} parent=11 // pred_region
          %s649 = ssub.s32 16, 16
          %650 = vsyncadd [#allocation12], %s649
          %s652 = sshll.u32 [#allocation11], 4
          %s653 = int_to_ptr.vmem [resolvable:$true] %s652
          %655 = dma.hbm_to_vmem [thread:$0]  %s14, 16, %s653, [#allocation12]
        $region60: #{vae_forward.1} parent=11 // pred_fallthru
          _
        // Predicated region
        $region61: #{vae_forward.1} parent=11 // pred_check
          %p656 = pneg %p394
        $region62: #{vae_forward.1} parent=11 // pred_check_branch
          %658 = sbr.rel (%p656) target = $region64
        $region63: #{vae_forward.1} parent=11 // pred_region
          %s660 = ssub.s32 768, 768
          %661 = vsyncadd [#allocation12], %s660
          %s662 = sshll.u32 [#allocation13], 4
          %s663 = int_to_ptr.vmem [resolvable:$true] %s662
          %668 = dma.hbm_to_vmem [thread:$0]  %s15, 768, %s663, [#allocation12], 64, 64, 4
        $region64: #{vae_forward.1} parent=11 // pred_fallthru
          _
        // Predicated region
        $region65: #{vae_forward.1} parent=11 // pred_check
          %p669 = pneg %p415
        $region66: #{vae_forward.1} parent=11 // pred_check_branch
          %671 = sbr.rel (%p669) target = $region68
        $region67: #{vae_forward.1} parent=11 // pred_region
          %s673 = ssub.s32 16, 16
          %674 = vsyncadd [#allocation15], %s673
          %s676 = sshll.u32 [#allocation14], 4
          %s677 = int_to_ptr.vmem [resolvable:$true] %s676
          %679 = dma.hbm_to_vmem [thread:$0]  %s16, 16, %s677, [#allocation15]
        $region68: #{vae_forward.1} parent=11 // pred_fallthru
          _
        // Predicated region
        $region69: #{vae_forward.1} parent=11 // pred_check
          %p680 = pneg %p436
        $region70: #{vae_forward.1} parent=11 // pred_check_branch
          %682 = sbr.rel (%p680) target = $region72
        $region71: #{vae_forward.1} parent=11 // pred_region
          %s684 = ssub.s32 6144, 6144
          %685 = vsyncadd [#allocation15], %s684
          %s686 = sshll.u32 [#allocation16], 4
          %s687 = int_to_ptr.vmem [resolvable:$true] %s686
          %692 = dma.hbm_to_vmem [thread:$0]  %s17, 6144, %s687, [#allocation15], 384, 384, 24
        $region72: #{vae_forward.1} parent=11 // pred_fallthru
          _
        // Predicated region
        $region73: #{vae_forward.1} parent=11 // pred_check
          %p693 = pneg %p457
        $region74: #{vae_forward.1} parent=11 // pred_check_branch
          %695 = sbr.rel (%p693) target = $region76
        $region75: #{vae_forward.1} parent=11 // pred_region
          %s697 = ssub.s32 96, 96
          %698 = vsyncadd [#allocation18], %s697
          %s700 = sshll.u32 [#allocation17], 4
          %s701 = int_to_ptr.vmem [resolvable:$true] %s700
          %703 = dma.hbm_to_vmem [thread:$0]  %s18, 96, %s701, [#allocation18]
        $region76: #{vae_forward.1} parent=11 // pred_fallthru
          _
      $region12: #{vae_forward.1} parent=5 // pred_fallthru
        _
      %p704 = scmp.lt.s32.totalorder %s43, 2
      // Predicated region
      $region77: #{vae_forward.1} parent=5 // pred_check
        %p705 = pneg %p704
      $region78: #{vae_forward.1} parent=5 // pred_check_branch
        %707 = sbr.rel (%p705) target = $region80
      $region79: #{vae_forward.1} parent=5 // pred_region
        // Predicated region
        $region81: #{vae_forward.1} parent=79 // pred_check
          %p708 = pneg %p63
        $region82: #{vae_forward.1} parent=79 // pred_check_branch
          %710 = sbr.rel (%p708) target = $region84
        $region83: #{vae_forward.1} parent=79 // pred_region
          %s711 = sand.u32 %s53, 1
          %s712 = scalar_lea.sflag [#allocation3], %s711
          %s713 = sand.u32 %s53, 1
          %s714 = smul.addr %s713, 48
          %s715 = scalar_lea.vmem [#allocation2], %s714
          %s717 = ssub.s32 768, 768
          %718 = vsyncadd %s712, %s717
          %s719 = smul.addr %s43, 6
          %s720 = smul.addr %s719, 128
          %s721 = scalar_lea.hbm %s0, %s720
          %s723 = sshll.u32 %s715, 4
          %s724 = int_to_ptr.vmem [resolvable:$true] %s723
          %726 = dma.hbm_to_vmem [thread:$0]  %s721, 768, %s724, %s712
        $region84: #{vae_forward.1} parent=79 // pred_fallthru
          _
        // Predicated region
        $region85: #{vae_forward.1} parent=79 // pred_check
          %p727 = pneg %p89
        $region86: #{vae_forward.1} parent=79 // pred_check_branch
          %729 = sbr.rel (%p727) target = $region88
        $region87: #{vae_forward.1} parent=79 // pred_region
          %p730 = scmp.lt.s32.totalorder %s43, 1
          %s731 = scalar_select %p730, %s43, 1
          %s732 = smul.addr %s731, 8
          %s733 = scalar_lea.vmem %s1, %s732
        $region88: #{vae_forward.1} parent=79 // pred_fallthru
          _
        // Predicated region
        $region89: #{vae_forward.1} parent=79 // pred_check
          %p734 = pneg %p115
        $region90: #{vae_forward.1} parent=79 // pred_check_branch
          %736 = sbr.rel (%p734) target = $region92
        $region91: #{vae_forward.1} parent=79 // pred_region
          %p737 = scmp.lt.s32.totalorder %s43, 1
          %s738 = scalar_select %p737, %s43, 1
          %s739 = smul.addr %s738, 8
          %s740 = scalar_lea.vmem %s2, %s739
        $region92: #{vae_forward.1} parent=79 // pred_fallthru
          _
      $region80: #{vae_forward.1} parent=5 // pred_fallthru
        _
      %p741 = scmp.le.s32.totalorder 1, %s43
      %p742 = scmp.lt.s32.totalorder %s43, 3
      %p743 = pnand %p741, %p742
      %p744 = pneg %p743
      // Predicated region
      $region93: #{vae_forward.1} parent=5 // pred_check
        _
      $region94: #{vae_forward.1} parent=5 // pred_check_branch
        %746 = sbr.rel (%p743) target = $region96
      $region95: #{vae_forward.1} parent=5 // pred_region
        %s747 = ssub.s32 %s43, 1
        %s748 = sand.u32 %s56, 1
        %s749 = scalar_lea.sflag [#allocation3], %s748
        %s750 = sand.u32 %s56, 1
        %s751 = smul.addr %s750, 48
        %s752 = scalar_lea.vmem [#allocation2], %s751
        // Predicated region
        $region97: #{vae_forward.1} parent=95 // pred_check
          %p753 = pneg %p69
        $region98: #{vae_forward.1} parent=95 // pred_check_branch
          %755 = sbr.rel (%p753) target = $region100
        $region99: #{vae_forward.1} parent=95 // pred_region
          %756 = dma.done %s749, 768
        $region100: #{vae_forward.1} parent=95 // pred_fallthru
          _
        // Predicated region
        $region101: #{vae_forward.1} parent=95 // pred_check
          %p757 = pneg %p163
        $region102: #{vae_forward.1} parent=95 // pred_check_branch
          %759 = sbr.rel (%p757) target = $region104
        $region103: #{vae_forward.1} parent=95 // pred_region
          %760 = dma.done [#allocation6], 16
        $region104: #{vae_forward.1} parent=95 // pred_fallthru
          _
        // Predicated region
        $region105: #{vae_forward.1} parent=95 // pred_check
          %p761 = pneg %p310
        $region106: #{vae_forward.1} parent=95 // pred_check_branch
          %763 = sbr.rel (%p761) target = $region108
        $region107: #{vae_forward.1} parent=95 // pred_region
          %764 = dma.done [#allocation6], 256
        $region108: #{vae_forward.1} parent=95 // pred_fallthru
          _
        // Predicated region
        $region109: #{vae_forward.1} parent=95 // pred_check
          %p765 = pneg %p331
        $region110: #{vae_forward.1} parent=95 // pred_check_branch
          %767 = sbr.rel (%p765) target = $region112
        $region111: #{vae_forward.1} parent=95 // pred_region
          %768 = dma.done [#allocation9], 16
        $region112: #{vae_forward.1} parent=95 // pred_fallthru
          _
        // Predicated region
        $region113: #{vae_forward.1} parent=95 // pred_check
          %p769 = pneg %p352
        $region114: #{vae_forward.1} parent=95 // pred_check_branch
          %771 = sbr.rel (%p769) target = $region116
        $region115: #{vae_forward.1} parent=95 // pred_region
          %772 = dma.done [#allocation9], 512
        $region116: #{vae_forward.1} parent=95 // pred_fallthru
          _
        // Predicated region
        $region117: #{vae_forward.1} parent=95 // pred_check
          %p773 = pneg %p373
        $region118: #{vae_forward.1} parent=95 // pred_check_branch
          %775 = sbr.rel (%p773) target = $region120
        $region119: #{vae_forward.1} parent=95 // pred_region
          %776 = dma.done [#allocation12], 16
        $region120: #{vae_forward.1} parent=95 // pred_fallthru
          _
        // Predicated region
        $region121: #{vae_forward.1} parent=95 // pred_check
          %p777 = pneg %p394
        $region122: #{vae_forward.1} parent=95 // pred_check_branch
          %779 = sbr.rel (%p777) target = $region124
        $region123: #{vae_forward.1} parent=95 // pred_region
          %780 = dma.done [#allocation12], 768
        $region124: #{vae_forward.1} parent=95 // pred_fallthru
          _
        // Predicated region
        $region125: #{vae_forward.1} parent=95 // pred_check
          %p781 = pneg %p415
        $region126: #{vae_forward.1} parent=95 // pred_check_branch
          %783 = sbr.rel (%p781) target = $region128
        $region127: #{vae_forward.1} parent=95 // pred_region
          %784 = dma.done [#allocation15], 16
        $region128: #{vae_forward.1} parent=95 // pred_fallthru
          _
        // Predicated region
        $region129: #{vae_forward.1} parent=95 // pred_check
          %p785 = pneg %p436
        $region130: #{vae_forward.1} parent=95 // pred_check_branch
          %787 = sbr.rel (%p785) target = $region132
        $region131: #{vae_forward.1} parent=95 // pred_region
          %788 = dma.done [#allocation15], 6144
        $region132: #{vae_forward.1} parent=95 // pred_fallthru
          _
        // Predicated region
        $region133: #{vae_forward.1} parent=95 // pred_check
          %p789 = pneg %p457
        $region134: #{vae_forward.1} parent=95 // pred_check_branch
          %791 = sbr.rel (%p789) target = $region136
        $region135: #{vae_forward.1} parent=95 // pred_region
          %792 = dma.done [#allocation18], 96
        $region136: #{vae_forward.1} parent=95 // pred_fallthru
          _
        %s793 = sand.u32 %s56, 1
        %s794 = scalar_lea.sflag [#allocation3], %s793
        %s795 = sand.u32 %s56, 1
        %s796 = smul.addr %s795, 48
        %s797 = scalar_lea.vmem [#allocation2], %s796
        %p798 = pneg %p69
        %p799 = pneg %p66
        %p800 = scmp.lt.s32.totalorder %s48, 1
        %s801 = scalar_select %p800, %s48, 1
        %s802 = smul.addr %s801, 8
        %s803 = scalar_lea.vmem %s1, %s802
        %p804 = pneg %p95
        %p805 = pneg %p92
        %p806 = scmp.lt.s32.totalorder %s48, 1
        %s807 = scalar_select %p806, %s48, 1
        %s808 = smul.addr %s807, 8
        %s809 = scalar_lea.vmem %s2, %s808
        %p810 = pneg %p121
        %p811 = pneg %p118
        %p812 = pneg %p142
        %p813 = pneg %p139
        %p814 = pneg %p163
        %p815 = pneg %p160
        %p816 = pneg %p184
        %p817 = pneg %p181
        %p818 = pneg %p205
        %p819 = pneg %p202
        %p820 = pneg %p226
        %p821 = pneg %p223
        %p822 = pneg %p247
        %p823 = pneg %p244
        %p824 = pneg %p268
        %p825 = pneg %p265
        %p826 = pneg %p289
        %p827 = pneg %p286
        %p828 = pneg %p310
        %p829 = pneg %p307
        %p830 = pneg %p331
        %p831 = pneg %p328
        %p832 = pneg %p352
        %p833 = pneg %p349
        %p834 = pneg %p373
        %p835 = pneg %p370
        %p836 = pneg %p394
        %p837 = pneg %p391
        %p838 = pneg %p415
        %p839 = pneg %p412
        %p840 = pneg %p436
        %p841 = pneg %p433
        %p842 = pneg %p457
        %p843 = pneg %p454
        %p844 = pneg %p483
        %p845 = pneg %p480
        %s846 = sand.u32 %s470, 1
        %s847 = scalar_lea.sflag [#allocation4], %s846
        %s848 = sand.u32 %s470, 1
        %s849 = smul.addr %s848, 48
        %s850 = scalar_lea.vmem [#allocation19], %s849
        %p851 = pneg %p509
        %p852 = pneg %p506
        %p853 = scmp.lt.s32.totalorder %s48, 1
        %s854 = scalar_select %p853, %s48, 1
        %s855 = smul.addr %s854, 8
        %s856 = scalar_lea.vmem %s20, %s855
        %p857 = pneg %p535
        %p858 = pneg %p532
        %s859 = sand.u32 %s48, 1
        %s860 = scalar_lea.sflag [#allocation21], %s859
        %s861 = sand.u32 %s522, 1
        %s862 = smul.addr %s861, 8
        %s863 = scalar_lea.vmem [#allocation20], %s862
        %p864 = pneg %p561
        %p865 = pneg %p558
        %s866 = sand.u32 %s48, 1
        %s867 = scalar_lea.sflag [#allocation21], %s866
        %s868 = sand.u32 %s548, 1
        %s869 = smul.addr %s868, 8
        %s870 = scalar_lea.vmem [#allocation22], %s869
        %p871 = scmp.lt.s32.totalorder %s48, 1
        %s872 = scalar_select %p871, %s48, 1
        %s873 = smul.addr %s872, 8
        %s874 = scalar_lea.vmem %s1, %s873
        %p875 = scmp.lt.s32.totalorder %s48, 1
        %s876 = scalar_select %p875, %s48, 1
        %s877 = smul.addr %s876, 8
        %s878 = scalar_lea.vmem %s2, %s877
        %p879 = scmp.lt.s32.totalorder %s48, 1
        %s880 = scalar_select %p879, %s48, 1
        %s881 = smul.addr %s880, 8
        %s882 = scalar_lea.vmem %s20, %s881
        %v884 = vld [vmem:[%s752] sm:$0xff]
        %v885 = vld [vmem:[%s752 + $0x8] sm:$0xff]
        %v886 = vld [vmem:[%s752 + $0x10] sm:$0xff]
        %v887 = vld [vmem:[%s752 + $0x18] sm:$0xff]
        %v888 = vld [vmem:[%s752 + $0x20] sm:$0xff]
        %v889 = vld [vmem:[%s752 + $0x28] sm:$0xff]
        %v890 = vpack.c.bf16 %v884, %v884
        %v891 = vpack.c.bf16 %v885, %v885
        %v892 = vpack.c.bf16 %v886, %v886
        %v893 = vpack.c.bf16 %v887, %v887
        %v894 = vpack.c.bf16 %v888, %v888
        %v895 = vpack.c.bf16 %v889, %v889
        %v896 = vld [vmem:[%s3] sm:$0xf]
        %v897 = vld [vmem:[%s3 + $0x4] sm:$0xf]
        %v898 = vld [vmem:[%s3 + $0x8] sm:$0xf]
        %v899 = vld [vmem:[%s3 + $0xc] sm:$0xf]
        %v900 = vld [vmem:[%s3 + $0x10] sm:$0xf]
        %v901 = vld [vmem:[%s3 + $0x14] sm:$0xf]
        %v902 = vld [vmem:[%s3 + $0x18] sm:$0xf]
        %v903 = vld [vmem:[%s3 + $0x1c] sm:$0xf]
        %v904 = vld [vmem:[%s3 + $0x20] sm:$0xf]
        %v905 = vld [vmem:[%s3 + $0x24] sm:$0xf]
        %v906 = vld [vmem:[%s3 + $0x28] sm:$0xf]
        %v907 = vld [vmem:[%s3 + $0x2c] sm:$0xf]
        %v908 = vld [vmem:[%s3 + $0x30] sm:$0xf]
        %v909 = vld [vmem:[%s3 + $0x34] sm:$0xf]
        %v910 = vld [vmem:[%s3 + $0x38] sm:$0xf]
        %v911 = vld [vmem:[%s3 + $0x3c] sm:$0xf]
        %v912 = vld [vmem:[%s3 + $0x40] sm:$0xf]
        %v913 = vld [vmem:[%s3 + $0x44] sm:$0xf]
        %v914 = vld [vmem:[%s3 + $0x48] sm:$0xf]
        %v915 = vld [vmem:[%s3 + $0x4c] sm:$0xf]
        %v916 = vld [vmem:[%s3 + $0x50] sm:$0xf]
        %v917 = vld [vmem:[%s3 + $0x54] sm:$0xf]
        %v918 = vld [vmem:[%s3 + $0x58] sm:$0xf]
        %v919 = vld [vmem:[%s3 + $0x5c] sm:$0xf]
        %v920 = vld [vmem:[%s3 + $0x60] sm:$0xf]
        %v921 = vld [vmem:[%s3 + $0x64] sm:$0xf]
        %v922 = vld [vmem:[%s3 + $0x68] sm:$0xf]
        %v923 = vld [vmem:[%s3 + $0x6c] sm:$0xf]
        %v924 = vld [vmem:[%s3 + $0x70] sm:$0xf]
        %v925 = vld [vmem:[%s3 + $0x74] sm:$0xf]
        %v926 = vld [vmem:[%s3 + $0x78] sm:$0xf]
        %v927 = vld [vmem:[%s3 + $0x7c] sm:$0xf]
        %v928 = vld [vmem:[%s3 + $0x80] sm:$0xf]
        %v929 = vld [vmem:[%s3 + $0x84] sm:$0xf]
        %v930 = vld [vmem:[%s3 + $0x88] sm:$0xf]
        %v931 = vld [vmem:[%s3 + $0x8c] sm:$0xf]
        %v932 = vld [vmem:[%s3 + $0x90] sm:$0xf]
        %v933 = vld [vmem:[%s3 + $0x94] sm:$0xf]
        %v934 = vld [vmem:[%s3 + $0x98] sm:$0xf]
        %v935 = vld [vmem:[%s3 + $0x9c] sm:$0xf]
        %v936 = vld [vmem:[%s3 + $0xa0] sm:$0xf]
        %v937 = vld [vmem:[%s3 + $0xa4] sm:$0xf]
        %v938 = vld [vmem:[%s3 + $0xa8] sm:$0xf]
        %v939 = vld [vmem:[%s3 + $0xac] sm:$0xf]
        %v940 = vld [vmem:[%s3 + $0xb0] sm:$0xf]
        %v941 = vld [vmem:[%s3 + $0xb4] sm:$0xf]
        %v942 = vld [vmem:[%s3 + $0xb8] sm:$0xf]
        %v943 = vld [vmem:[%s3 + $0xbc] sm:$0xf]
        %v944 = vld [vmem:[%s3 + $0xc0] sm:$0xf]
        %v945 = vld [vmem:[%s3 + $0xc4] sm:$0xf]
        %v946 = vld [vmem:[%s3 + $0xc8] sm:$0xf]
        %v947 = vld [vmem:[%s3 + $0xcc] sm:$0xf]
        %v948 = vld [vmem:[%s3 + $0xd0] sm:$0xf]
        %v949 = vld [vmem:[%s3 + $0xd4] sm:$0xf]
        %v950 = vld [vmem:[%s3 + $0xd8] sm:$0xf]
        %v951 = vld [vmem:[%s3 + $0xdc] sm:$0xf]
        %v952 = vld [vmem:[%s3 + $0xe0] sm:$0xf]
        %v953 = vld [vmem:[%s3 + $0xe4] sm:$0xf]
        %v954 = vld [vmem:[%s3 + $0xe8] sm:$0xf]
        %v955 = vld [vmem:[%s3 + $0xec] sm:$0xf]
        %v956 = vld [vmem:[%s3 + $0xf0] sm:$0xf]
        %v957 = vld [vmem:[%s3 + $0xf4] sm:$0xf]
        %v958 = vld [vmem:[%s3 + $0xf8] sm:$0xf]
        %v959 = vld [vmem:[%s3 + $0xfc] sm:$0xf]
        %v960 = vld [vmem:[%s3 + $0x100] sm:$0xf]
        %v961 = vld [vmem:[%s3 + $0x104] sm:$0xf]
        %v962 = vld [vmem:[%s3 + $0x108] sm:$0xf]
        %v963 = vld [vmem:[%s3 + $0x10c] sm:$0xf]
        %v964 = vld [vmem:[%s3 + $0x110] sm:$0xf]
        %v965 = vld [vmem:[%s3 + $0x114] sm:$0xf]
        %v966 = vld [vmem:[%s3 + $0x118] sm:$0xf]
        %v967 = vld [vmem:[%s3 + $0x11c] sm:$0xf]
        %v968 = vld [vmem:[%s3 + $0x120] sm:$0xf]
        %v969 = vld [vmem:[%s3 + $0x124] sm:$0xf]
        %v970 = vld [vmem:[%s3 + $0x128] sm:$0xf]
        %v971 = vld [vmem:[%s3 + $0x12c] sm:$0xf]
        %v972 = vld [vmem:[%s3 + $0x130] sm:$0xf]
        %v973 = vld [vmem:[%s3 + $0x134] sm:$0xf]
        %v974 = vld [vmem:[%s3 + $0x138] sm:$0xf]
        %v975 = vld [vmem:[%s3 + $0x13c] sm:$0xf]
        %v976 = vld [vmem:[%s3 + $0x140] sm:$0xf]
        %v977 = vld [vmem:[%s3 + $0x144] sm:$0xf]
        %v978 = vld [vmem:[%s3 + $0x148] sm:$0xf]
        %v979 = vld [vmem:[%s3 + $0x14c] sm:$0xf]
        %v980 = vld [vmem:[%s3 + $0x150] sm:$0xf]
        %v981 = vld [vmem:[%s3 + $0x154] sm:$0xf]
        %v982 = vld [vmem:[%s3 + $0x158] sm:$0xf]
        %v983 = vld [vmem:[%s3 + $0x15c] sm:$0xf]
        %v984 = vld [vmem:[%s3 + $0x160] sm:$0xf]
        %v985 = vld [vmem:[%s3 + $0x164] sm:$0xf]
        %v986 = vld [vmem:[%s3 + $0x168] sm:$0xf]
        %v987 = vld [vmem:[%s3 + $0x16c] sm:$0xf]
        %v988 = vld [vmem:[%s3 + $0x170] sm:$0xf]
        %v989 = vld [vmem:[%s3 + $0x174] sm:$0xf]
        %v990 = vld [vmem:[%s3 + $0x178] sm:$0xf]
        %v991 = vld [vmem:[%s3 + $0x17c] sm:$0xf]
        %v992 = vld [vmem:[#allocation5] sm:$0x1]
        %v994 = vlaneseq
        %v995 = vshrl.u32 %v994, 7
        %v996 = vsub.s32 0, %v995
        %v997 = vrot.slane %v992, %v996
        %v1095 = vunpack.c.l.b16 %v896
        %v1096 = vunpack.c.l.b16 %v897
        %v1097 = vunpack.c.l.b16 %v898
        %v1098 = vunpack.c.l.b16 %v899
        %v1099 = vunpack.c.l.b16 %v900
        %v1100 = vunpack.c.l.b16 %v901
        %v1101 = vunpack.c.l.b16 %v902
        %v1102 = vunpack.c.l.b16 %v903
        %v1103 = vunpack.c.l.b16 %v904
        %v1104 = vunpack.c.l.b16 %v905
        %v1105 = vunpack.c.l.b16 %v906
        %v1106 = vunpack.c.l.b16 %v907
        %v1107 = vunpack.c.l.b16 %v908
        %v1108 = vunpack.c.l.b16 %v909
        %v1109 = vunpack.c.l.b16 %v910
        %v1110 = vunpack.c.l.b16 %v911
        %v1111 = vunpack.c.l.b16 %v912
        %v1112 = vunpack.c.l.b16 %v913
        %v1113 = vunpack.c.l.b16 %v914
        %v1114 = vunpack.c.l.b16 %v915
        %v1115 = vunpack.c.l.b16 %v916
        %v1116 = vunpack.c.l.b16 %v917
        %v1117 = vunpack.c.l.b16 %v918
        %v1118 = vunpack.c.l.b16 %v919
        %v1119 = vunpack.c.l.b16 %v920
        %v1120 = vunpack.c.l.b16 %v921
        %v1121 = vunpack.c.l.b16 %v922
        %v1122 = vunpack.c.l.b16 %v923
        %v1123 = vunpack.c.l.b16 %v924
        %v1124 = vunpack.c.l.b16 %v925
        %v1125 = vunpack.c.l.b16 %v926
        %v1126 = vunpack.c.l.b16 %v927
        %v1127 = vunpack.c.l.b16 %v928
        %v1128 = vunpack.c.l.b16 %v929
        %v1129 = vunpack.c.l.b16 %v930
        %v1130 = vunpack.c.l.b16 %v931
        %v1131 = vunpack.c.l.b16 %v932
        %v1132 = vunpack.c.l.b16 %v933
        %v1133 = vunpack.c.l.b16 %v934
        %v1134 = vunpack.c.l.b16 %v935
        %v1135 = vunpack.c.l.b16 %v936
        %v1136 = vunpack.c.l.b16 %v937
        %v1137 = vunpack.c.l.b16 %v938
        %v1138 = vunpack.c.l.b16 %v939
        %v1139 = vunpack.c.l.b16 %v940
        %v1140 = vunpack.c.l.b16 %v941
        %v1141 = vunpack.c.l.b16 %v942
        %v1142 = vunpack.c.l.b16 %v943
        %v1143 = vunpack.c.l.b16 %v944
        %v1144 = vunpack.c.l.b16 %v945
        %v1145 = vunpack.c.l.b16 %v946
        %v1146 = vunpack.c.l.b16 %v947
        %v1147 = vunpack.c.l.b16 %v948
        %v1148 = vunpack.c.l.b16 %v949
        %v1149 = vunpack.c.l.b16 %v950
        %v1150 = vunpack.c.l.b16 %v951
        %v1151 = vunpack.c.l.b16 %v952
        %v1152 = vunpack.c.l.b16 %v953
        %v1153 = vunpack.c.l.b16 %v954
        %v1154 = vunpack.c.l.b16 %v955
        %v1155 = vunpack.c.l.b16 %v956
        %v1156 = vunpack.c.l.b16 %v957
        %v1157 = vunpack.c.l.b16 %v958
        %v1158 = vunpack.c.l.b16 %v959
        %v1159 = vunpack.c.l.b16 %v960
        %v1160 = vunpack.c.l.b16 %v961
        %v1161 = vunpack.c.l.b16 %v962
        %v1162 = vunpack.c.l.b16 %v963
        %v1163 = vunpack.c.l.b16 %v964
        %v1164 = vunpack.c.l.b16 %v965
        %v1165 = vunpack.c.l.b16 %v966
        %v1166 = vunpack.c.l.b16 %v967
        %v1167 = vunpack.c.l.b16 %v968
        %v1168 = vunpack.c.l.b16 %v969
        %v1169 = vunpack.c.l.b16 %v970
        %v1170 = vunpack.c.l.b16 %v971
        %v1171 = vunpack.c.l.b16 %v972
        %v1172 = vunpack.c.l.b16 %v973
        %v1173 = vunpack.c.l.b16 %v974
        %v1174 = vunpack.c.l.b16 %v975
        %v1175 = vunpack.c.l.b16 %v976
        %v1176 = vunpack.c.l.b16 %v977
        %v1177 = vunpack.c.l.b16 %v978
        %v1178 = vunpack.c.l.b16 %v979
        %v1179 = vunpack.c.l.b16 %v980
        %v1180 = vunpack.c.l.b16 %v981
        %v1181 = vunpack.c.l.b16 %v982
        %v1182 = vunpack.c.l.b16 %v983
        %v1183 = vunpack.c.l.b16 %v984
        %v1184 = vunpack.c.l.b16 %v985
        %v1185 = vunpack.c.l.b16 %v986
        %v1186 = vunpack.c.l.b16 %v987
        %v1187 = vunpack.c.l.b16 %v988
        %v1188 = vunpack.c.l.b16 %v989
        %v1189 = vunpack.c.l.b16 %v990
        %v1190 = vunpack.c.l.b16 %v991
        %v1191 = vpack.c.b16 %v1096, %v1095
        %v1192 = vpack.c.b16 %v1098, %v1097
        %v1193 = vpack.c.b16 %v1100, %v1099
        %v1194 = vpack.c.b16 %v1102, %v1101
        %v1195 = vpack.c.b16 %v1104, %v1103
        %v1196 = vpack.c.b16 %v1106, %v1105
        %v1197 = vpack.c.b16 %v1108, %v1107
        %v1198 = vpack.c.b16 %v1110, %v1109
        %v1199 = vpack.c.b16 %v1112, %v1111
        %v1200 = vpack.c.b16 %v1114, %v1113
        %v1201 = vpack.c.b16 %v1116, %v1115
        %v1202 = vpack.c.b16 %v1118, %v1117
        %v1203 = vpack.c.b16 %v1120, %v1119
        %v1204 = vpack.c.b16 %v1122, %v1121
        %v1205 = vpack.c.b16 %v1124, %v1123
        %v1206 = vpack.c.b16 %v1126, %v1125
        %v1207 = vpack.c.b16 %v1128, %v1127
        %v1208 = vpack.c.b16 %v1130, %v1129
        %v1209 = vpack.c.b16 %v1132, %v1131
        %v1210 = vpack.c.b16 %v1134, %v1133
        %v1211 = vpack.c.b16 %v1136, %v1135
        %v1212 = vpack.c.b16 %v1138, %v1137
        %v1213 = vpack.c.b16 %v1140, %v1139
        %v1214 = vpack.c.b16 %v1142, %v1141
        %v1215 = vpack.c.b16 %v1144, %v1143
        %v1216 = vpack.c.b16 %v1146, %v1145
        %v1217 = vpack.c.b16 %v1148, %v1147
        %v1218 = vpack.c.b16 %v1150, %v1149
        %v1219 = vpack.c.b16 %v1152, %v1151
        %v1220 = vpack.c.b16 %v1154, %v1153
        %v1221 = vpack.c.b16 %v1156, %v1155
        %v1222 = vpack.c.b16 %v1158, %v1157
        %v1223 = vpack.c.b16 %v1160, %v1159
        %v1224 = vpack.c.b16 %v1162, %v1161
        %v1225 = vpack.c.b16 %v1164, %v1163
        %v1226 = vpack.c.b16 %v1166, %v1165
        %v1227 = vpack.c.b16 %v1168, %v1167
        %v1228 = vpack.c.b16 %v1170, %v1169
        %v1229 = vpack.c.b16 %v1172, %v1171
        %v1230 = vpack.c.b16 %v1174, %v1173
        %v1231 = vpack.c.b16 %v1176, %v1175
        %v1232 = vpack.c.b16 %v1178, %v1177
        %v1233 = vpack.c.b16 %v1180, %v1179
        %v1234 = vpack.c.b16 %v1182, %v1181
        %v1235 = vpack.c.b16 %v1184, %v1183
        %v1236 = vpack.c.b16 %v1186, %v1185
        %v1237 = vpack.c.b16 %v1188, %v1187
        %v1238 = vpack.c.b16 %v1190, %v1189
        %1287 = vmatprep.subr.bf16.mxu0 0
        %1288 = vmatpush1.bf16.msra.mxu0 %v1191
        %1289 = vmatprep.subr.bf16.mxu0 0
        %1290 = vmatpush1.bf16.msra.mxu0 %v1192
        %1291 = vmatprep.subr.bf16.mxu0 0
        %1292 = vmatpush1.bf16.msra.mxu0 %v1193
        %1293 = vmatprep.subr.bf16.mxu0 0
        %1294 = vmatpush1.bf16.msra.mxu0 %v1194
        %1295 = vmatprep.subr.bf16.mxu0 0
        %1296 = vmatpush1.bf16.msra.mxu0 %v1195
        %1297 = vmatprep.subr.bf16.mxu0 0
        %1298 = vmatpush1.bf16.msra.mxu0 %v1196
        %1299 = vmatprep.subr.bf16.mxu0 0
        %1300 = vmatpush1.bf16.msra.mxu0 %v1197
        %1301 = vmatprep.subr.bf16.mxu0 0
        %1302 = vmatpush1.bf16.msra.mxu0 %v1198
        %1303 = vmatprep.subr.bf16.mxu0 0
        %1304 = vmatpush1.bf16.msra.mxu0 %v1199
        %1305 = vmatprep.subr.bf16.mxu0 0
        %1306 = vmatpush1.bf16.msra.mxu0 %v1200
        %1307 = vmatprep.subr.bf16.mxu0 0
        %1308 = vmatpush1.bf16.msra.mxu0 %v1201
        %1309 = vmatprep.subr.bf16.mxu0 0
        %1310 = vmatpush1.bf16.msra.mxu0 %v1202
        %1311 = vmatprep.subr.bf16.mxu0 0
        %1312 = vmatpush1.bf16.msra.mxu0 %v1203
        %1313 = vmatprep.subr.bf16.mxu0 0
        %1314 = vmatpush1.bf16.msra.mxu0 %v1204
        %1315 = vmatprep.subr.bf16.mxu0 0
        %1316 = vmatpush1.bf16.msra.mxu0 %v1205
        %1317 = vmatprep.subr.bf16.mxu0 0
        %1318 = vmatpush1.bf16.msra.mxu0 %v1206
        %1319 = vmatprep.mubr.bf16.mxu0 %v891
        %1320 = vmatmul.mubr.bf16.gmra.mrb[0].mxu0 %v890
        %v1321 = vpop.f32.mrb[0].mxu0
        %v1322 = vadd.f32 %v997, %v1321
        %v1323 = vpop.f32.mrb[0].mxu0
        %v1324 = vpop.f32.mrb[0].mxu0
        %v1325 = vpop.f32.mrb[0].mxu0
        %1326 = vdwg.mxu0
        %1327 = vmatprep.subr.bf16.mxu0 0
        %1328 = vmatpush1.bf16.msra.mxu0 %v1207
        %1329 = vmatprep.subr.bf16.mxu0 0
        %1330 = vmatpush1.bf16.msra.mxu0 %v1208
        %1331 = vmatprep.subr.bf16.mxu0 0
        %1332 = vmatpush1.bf16.msra.mxu0 %v1209
        %1333 = vmatprep.subr.bf16.mxu0 0
        %1334 = vmatpush1.bf16.msra.mxu0 %v1210
        %1335 = vmatprep.subr.bf16.mxu0 0
        %1336 = vmatpush1.bf16.msra.mxu0 %v1211
        %1337 = vmatprep.subr.bf16.mxu0 0
        %1338 = vmatpush1.bf16.msra.mxu0 %v1212
        %1339 = vmatprep.subr.bf16.mxu0 0
        %1340 = vmatpush1.bf16.msra.mxu0 %v1213
        %1341 = vmatprep.subr.bf16.mxu0 0
        %1342 = vmatpush1.bf16.msra.mxu0 %v1214
        %1343 = vmatprep.subr.bf16.mxu0 0
        %1344 = vmatpush1.bf16.msra.mxu0 %v1215
        %1345 = vmatprep.subr.bf16.mxu0 0
        %1346 = vmatpush1.bf16.msra.mxu0 %v1216
        %1347 = vmatprep.subr.bf16.mxu0 0
        %1348 = vmatpush1.bf16.msra.mxu0 %v1217
        %1349 = vmatprep.subr.bf16.mxu0 0
        %1350 = vmatpush1.bf16.msra.mxu0 %v1218
        %1351 = vmatprep.subr.bf16.mxu0 0
        %1352 = vmatpush1.bf16.msra.mxu0 %v1219
        %1353 = vmatprep.subr.bf16.mxu0 0
        %1354 = vmatpush1.bf16.msra.mxu0 %v1220
        %1355 = vmatprep.subr.bf16.mxu0 0
        %1356 = vmatpush1.bf16.msra.mxu0 %v1221
        %1357 = vmatprep.subr.bf16.mxu0 0
        %1358 = vmatpush1.bf16.msra.mxu0 %v1222
        %1359 = vmatprep.mubr.bf16.mxu0 %v893
        %1360 = vmatmul.mubr.bf16.gmra.mrb[0].mxu0 %v892
        %v1361 = vpop.f32.mrb[0].mxu0
        %v1362 = vadd.f32 %v1322, %v1361
        %v1363 = vpop.f32.mrb[0].mxu0
        %v1364 = vpop.f32.mrb[0].mxu0
        %v1365 = vpop.f32.mrb[0].mxu0
        %1366 = vdwg.mxu0
        %1367 = vmatprep.subr.bf16.mxu0 0
        %1368 = vmatpush1.bf16.msra.mxu0 %v1223
        %1369 = vmatprep.subr.bf16.mxu0 0
        %1370 = vmatpush1.bf16.msra.mxu0 %v1224
        %1371 = vmatprep.subr.bf16.mxu0 0
        %1372 = vmatpush1.bf16.msra.mxu0 %v1225
        %1373 = vmatprep.subr.bf16.mxu0 0
        %1374 = vmatpush1.bf16.msra.mxu0 %v1226
        %1375 = vmatprep.subr.bf16.mxu0 0
        %1376 = vmatpush1.bf16.msra.mxu0 %v1227
        %1377 = vmatprep.subr.bf16.mxu0 0
        %1378 = vmatpush1.bf16.msra.mxu0 %v1228
        %1379 = vmatprep.subr.bf16.mxu0 0
        %1380 = vmatpush1.bf16.msra.mxu0 %v1229
        %1381 = vmatprep.subr.bf16.mxu0 0
        %1382 = vmatpush1.bf16.msra.mxu0 %v1230
        %1383 = vmatprep.subr.bf16.mxu0 0
        %1384 = vmatpush1.bf16.msra.mxu0 %v1231
        %1385 = vmatprep.subr.bf16.mxu0 0
        %1386 = vmatpush1.bf16.msra.mxu0 %v1232
        %1387 = vmatprep.subr.bf16.mxu0 0
        %1388 = vmatpush1.bf16.msra.mxu0 %v1233
        %1389 = vmatprep.subr.bf16.mxu0 0
        %1390 = vmatpush1.bf16.msra.mxu0 %v1234
        %1391 = vmatprep.subr.bf16.mxu0 0
        %1392 = vmatpush1.bf16.msra.mxu0 %v1235
        %1393 = vmatprep.subr.bf16.mxu0 0
        %1394 = vmatpush1.bf16.msra.mxu0 %v1236
        %1395 = vmatprep.subr.bf16.mxu0 0
        %1396 = vmatpush1.bf16.msra.mxu0 %v1237
        %1397 = vmatprep.subr.bf16.mxu0 0
        %1398 = vmatpush1.bf16.msra.mxu0 %v1238
        %1399 = vmatprep.mubr.bf16.mxu0 %v895
        %1400 = vmatmul.mubr.bf16.gmra.mrb[0].mxu0 %v894
        %v1401 = vpop.f32.mrb[0].mxu0
        %v1402 = vadd.f32 %v1362, %v1401
        %v1403 = vpop.f32.mrb[0].mxu0
        %v1404 = vpop.f32.mrb[0].mxu0
        %v1405 = vpop.f32.mrb[0].mxu0
        %1406 = vdwg.mxu0
        %v1407 = vmax.f32 %v1402, 0.0
        %v1408 = vpack.c.bf16 %v1407, %v1407
        %v1409 = vld [vmem:[%s5] sm:$0xf]
        %v1410 = vld [vmem:[%s5 + $0x4] sm:$0xf]
        %v1411 = vld [vmem:[%s5 + $0x8] sm:$0xf]
        %v1412 = vld [vmem:[%s5 + $0xc] sm:$0xf]
        %v1413 = vld [vmem:[%s5 + $0x10] sm:$0xf]
        %v1414 = vld [vmem:[%s5 + $0x14] sm:$0xf]
        %v1415 = vld [vmem:[%s5 + $0x18] sm:$0xf]
        %v1416 = vld [vmem:[%s5 + $0x1c] sm:$0xf]
        %v1417 = vld [vmem:[%s5 + $0x20] sm:$0xf]
        %v1418 = vld [vmem:[%s5 + $0x24] sm:$0xf]
        %v1419 = vld [vmem:[%s5 + $0x28] sm:$0xf]
        %v1420 = vld [vmem:[%s5 + $0x2c] sm:$0xf]
        %v1421 = vld [vmem:[%s5 + $0x30] sm:$0xf]
        %v1422 = vld [vmem:[%s5 + $0x34] sm:$0xf]
        %v1423 = vld [vmem:[%s5 + $0x38] sm:$0xf]
        %v1424 = vld [vmem:[%s5 + $0x3c] sm:$0xf]
        %v1425 = vld [vmem:[%s6] sm:$0x1]
        %v1427 = vlaneseq
        %v1428 = vshrl.u32 %v1427, 7
        %v1429 = vsub.s32 0, %v1428
        %v1430 = vrot.slane %v1425, %v1429
        %v1448 = vunpack.c.l.b16 %v1409
        %v1449 = vunpack.c.l.b16 %v1410
        %v1450 = vunpack.c.l.b16 %v1411
        %v1451 = vunpack.c.l.b16 %v1412
        %v1452 = vunpack.c.l.b16 %v1413
        %v1453 = vunpack.c.l.b16 %v1414
        %v1454 = vunpack.c.l.b16 %v1415
        %v1455 = vunpack.c.l.b16 %v1416
        %v1456 = vunpack.c.l.b16 %v1417
        %v1457 = vunpack.c.l.b16 %v1418
        %v1458 = vunpack.c.l.b16 %v1419
        %v1459 = vunpack.c.l.b16 %v1420
        %v1460 = vunpack.c.l.b16 %v1421
        %v1461 = vunpack.c.l.b16 %v1422
        %v1462 = vunpack.c.l.b16 %v1423
        %v1463 = vunpack.c.l.b16 %v1424
        %v1464 = vpack.c.b16 %v1449, %v1448
        %v1465 = vpack.c.b16 %v1451, %v1450
        %v1466 = vpack.c.b16 %v1453, %v1452
        %v1467 = vpack.c.b16 %v1455, %v1454
        %v1468 = vpack.c.b16 %v1457, %v1456
        %v1469 = vpack.c.b16 %v1459, %v1458
        %v1470 = vpack.c.b16 %v1461, %v1460
        %v1471 = vpack.c.b16 %v1463, %v1462
        %1480 = vmatprep.subr.bf16.mxu0 0
        %1481 = vmatpush1.bf16.msra.mxu0 %v1464
        %1482 = vmatprep.subr.bf16.mxu0 0
        %1483 = vmatpush1.bf16.msra.mxu0 %v1465
        %1484 = vmatprep.subr.bf16.mxu0 0
        %1485 = vmatpush1.bf16.msra.mxu0 %v1466
        %1486 = vmatprep.subr.bf16.mxu0 0
        %1487 = vmatpush1.bf16.msra.mxu0 %v1467
        %1488 = vmatprep.subr.bf16.mxu0 0
        %1489 = vmatpush1.bf16.msra.mxu0 %v1468
        %1490 = vmatprep.subr.bf16.mxu0 0
        %1491 = vmatpush1.bf16.msra.mxu0 %v1469
        %1492 = vmatprep.subr.bf16.mxu0 0
        %1493 = vmatpush1.bf16.msra.mxu0 %v1470
        %1494 = vmatprep.subr.bf16.mxu0 0
        %1495 = vmatpush1.bf16.msra.mxu0 %v1471
        %1496 = vmatprep.subr.bf16.mxu0 0
        %1497 = vmatpush1.bf16.msra.mxu0 0
        %1498 = vmatprep.subr.bf16.mxu0 0
        %1499 = vmatpush1.bf16.msra.mxu0 0
        %1500 = vmatprep.subr.bf16.mxu0 0
        %1501 = vmatpush1.bf16.msra.mxu0 0
        %1502 = vmatprep.subr.bf16.mxu0 0
        %1503 = vmatpush1.bf16.msra.mxu0 0
        %1504 = vmatprep.subr.bf16.mxu0 0
        %1505 = vmatpush1.bf16.msra.mxu0 0
        %1506 = vmatprep.subr.bf16.mxu0 0
        %1507 = vmatpush1.bf16.msra.mxu0 0
        %1508 = vmatprep.subr.bf16.mxu0 0
        %1509 = vmatpush1.bf16.msra.mxu0 0
        %1510 = vmatprep.subr.bf16.mxu0 0
        %1511 = vmatpush1.bf16.msra.mxu0 0
        %1512 = vmatprep.mubr.bf16.mxu0 0
        %1513 = vmatmul.mubr.bf16.gmra.mrb[0].mxu0 %v1408
        %v1514 = vpop.f32.mrb[0].mxu0
        %v1515 = vadd.f32 %v1430, %v1514
        %v1516 = vpop.f32.mrb[0].mxu0
        %v1517 = vpop.f32.mrb[0].mxu0
        %v1518 = vpop.f32.mrb[0].mxu0
        %1519 = vdwg.mxu0
        %v1520 = vmax.f32 %v1515, 0.0
        %v1521 = vpack.c.bf16 %v1520, %v1520
        %v1522 = vld [vmem:[%s7] sm:$0xf]
        %v1523 = vld [vmem:[%s7 + $0x4] sm:$0xf]
        %v1524 = vld [vmem:[%s7 + $0x8] sm:$0xf]
        %v1525 = vld [vmem:[%s7 + $0xc] sm:$0xf]
        %v1526 = vld [vmem:[%s7 + $0x10] sm:$0xf]
        %v1527 = vld [vmem:[%s7 + $0x14] sm:$0xf]
        %v1528 = vld [vmem:[%s7 + $0x18] sm:$0xf]
        %v1529 = vld [vmem:[%s7 + $0x1c] sm:$0xf]
        %v1530 = vld [vmem:[%s7 + $0x20] sm:$0xf]
        %v1531 = vld [vmem:[%s7 + $0x24] sm:$0xf]
        %v1532 = vld [vmem:[%s7 + $0x28] sm:$0xf]
        %v1533 = vld [vmem:[%s7 + $0x2c] sm:$0xf]
        %v1534 = vld [vmem:[%s8] sm:$0x1]
        %v1536 = vlaneseq
        %v1537 = vshrl.u32 %v1536, 7
        %v1538 = vsub.s32 0, %v1537
        %v1539 = vrot.slane %v1534, %v1538
        %v1553 = vunpack.c.l.b16 %v1522
        %v1554 = vunpack.c.l.b16 %v1523
        %v1555 = vunpack.c.l.b16 %v1524
        %v1556 = vunpack.c.l.b16 %v1525
        %v1557 = vunpack.c.l.b16 %v1526
        %v1558 = vunpack.c.l.b16 %v1527
        %v1559 = vunpack.c.l.b16 %v1528
        %v1560 = vunpack.c.l.b16 %v1529
        %v1561 = vunpack.c.l.b16 %v1530
        %v1562 = vunpack.c.l.b16 %v1531
        %v1563 = vunpack.c.l.b16 %v1532
        %v1564 = vunpack.c.l.b16 %v1533
        %v1565 = vpack.c.b16 %v1554, %v1553
        %v1566 = vpack.c.b16 %v1556, %v1555
        %v1567 = vpack.c.b16 %v1558, %v1557
        %v1568 = vpack.c.b16 %v1560, %v1559
        %v1569 = vpack.c.b16 %v1562, %v1561
        %v1570 = vpack.c.b16 %v1564, %v1563
        %vm1577 = vcmask 785408
        %v1579 = vsel %vm1577, %v1521, 0
        %1581 = vmatprep.subr.bf16.mxu0 0
        %1582 = vmatpush1.bf16.msra.mxu0 %v1565
        %1583 = vmatprep.subr.bf16.mxu0 0
        %1584 = vmatpush1.bf16.msra.mxu0 %v1566
        %1585 = vmatprep.subr.bf16.mxu0 0
        %1586 = vmatpush1.bf16.msra.mxu0 %v1567
        %1587 = vmatprep.subr.bf16.mxu0 0
        %1588 = vmatpush1.bf16.msra.mxu0 %v1568
        %1589 = vmatprep.subr.bf16.mxu0 0
        %1590 = vmatpush1.bf16.msra.mxu0 %v1569
        %1591 = vmatprep.subr.bf16.mxu0 0
        %1592 = vmatpush1.bf16.msra.mxu0 %v1570
        %1593 = vmatprep.subr.bf16.mxu0 0
        %1594 = vmatpush1.bf16.msra.mxu0 0
        %1595 = vmatprep.subr.bf16.mxu0 0
        %1596 = vmatpush1.bf16.msra.mxu0 0
        %1597 = vmatprep.subr.bf16.mxu0 0
        %1598 = vmatpush1.bf16.msra.mxu0 0
        %1599 = vmatprep.subr.bf16.mxu0 0
        %1600 = vmatpush1.bf16.msra.mxu0 0
        %1601 = vmatprep.subr.bf16.mxu0 0
        %1602 = vmatpush1.bf16.msra.mxu0 0
        %1603 = vmatprep.subr.bf16.mxu0 0
        %1604 = vmatpush1.bf16.msra.mxu0 0
        %1605 = vmatprep.subr.bf16.mxu0 0
        %1606 = vmatpush1.bf16.msra.mxu0 0
        %1607 = vmatprep.subr.bf16.mxu0 0
        %1608 = vmatpush1.bf16.msra.mxu0 0
        %1609 = vmatprep.subr.bf16.mxu0 0
        %1610 = vmatpush1.bf16.msra.mxu0 0
        %1611 = vmatprep.subr.bf16.mxu0 0
        %1612 = vmatpush1.bf16.msra.mxu0 0
        %1613 = vmatprep.mubr.bf16.mxu0 0
        %1614 = vmatmul.mubr.bf16.gmra.mrb[0].mxu0 %v1579
        %v1615 = vpop.f32.mrb[0].mxu0
        %v1616 = vadd.f32 %v1539, %v1615
        %v1617 = vpop.f32.mrb[0].mxu0
        %v1618 = vpop.f32.mrb[0].mxu0
        %v1619 = vpop.f32.mrb[0].mxu0
        %1620 = vdwg.mxu0
        %v1621 = vmax.f32 %v1616, 0.0
        %v1622 = vpack.c.bf16 %v1621, %v1621
        %v1623 = vld [vmem:[%s9] sm:$0xf]
        %v1624 = vld [vmem:[%s9 + $0x4] sm:$0xf]
        %v1625 = vld [vmem:[%s9 + $0x8] sm:$0xf]
        %v1626 = vld [vmem:[%s9 + $0xc] sm:$0xf]
        %v1627 = vld [vmem:[%s9 + $0x10] sm:$0xf]
        %v1628 = vld [vmem:[%s9 + $0x14] sm:$0xf]
        %v1629 = vld [vmem:[%s9 + $0x18] sm:$0xf]
        %v1630 = vld [vmem:[%s9 + $0x1c] sm:$0xf]
        %v1631 = vld [vmem:[%s10] sm:$0x1]
        %v1633 = vlaneseq
        %v1634 = vshrl.u32 %v1633, 7
        %v1635 = vsub.s32 0, %v1634
        %v1636 = vrot.slane %v1631, %v1635
        %v1646 = vunpack.c.l.b16 %v1623
        %v1647 = vunpack.c.l.b16 %v1624
        %v1648 = vunpack.c.l.b16 %v1625
        %v1649 = vunpack.c.l.b16 %v1626
        %v1650 = vunpack.c.l.b16 %v1627
        %v1651 = vunpack.c.l.b16 %v1628
        %v1652 = vunpack.c.l.b16 %v1629
        %v1653 = vunpack.c.l.b16 %v1630
        %v1654 = vpack.c.b16 %v1647, %v1646
        %v1655 = vpack.c.b16 %v1649, %v1648
        %v1656 = vpack.c.b16 %v1651, %v1650
        %v1657 = vpack.c.b16 %v1653, %v1652
        %vm1662 = vcmask 523264
        %v1664 = vsel %vm1662, %v1622, 0
        %1666 = vmatprep.subr.bf16.mxu0 0
        %1667 = vmatpush1.bf16.msra.mxu0 %v1654
        %1668 = vmatprep.subr.bf16.mxu0 0
        %1669 = vmatpush1.bf16.msra.mxu0 %v1655
        %1670 = vmatprep.subr.bf16.mxu0 0
        %1671 = vmatpush1.bf16.msra.mxu0 %v1656
        %1672 = vmatprep.subr.bf16.mxu0 0
        %1673 = vmatpush1.bf16.msra.mxu0 %v1657
        %1674 = vmatprep.subr.bf16.mxu0 0
        %1675 = vmatpush1.bf16.msra.mxu0 0
        %1676 = vmatprep.subr.bf16.mxu0 0
        %1677 = vmatpush1.bf16.msra.mxu0 0
        %1678 = vmatprep.subr.bf16.mxu0 0
        %1679 = vmatpush1.bf16.msra.mxu0 0
        %1680 = vmatprep.subr.bf16.mxu0 0
        %1681 = vmatpush1.bf16.msra.mxu0 0
        %1682 = vmatprep.subr.bf16.mxu0 0
        %1683 = vmatpush1.bf16.msra.mxu0 0
        %1684 = vmatprep.subr.bf16.mxu0 0
        %1685 = vmatpush1.bf16.msra.mxu0 0
        %1686 = vmatprep.subr.bf16.mxu0 0
        %1687 = vmatpush1.bf16.msra.mxu0 0
        %1688 = vmatprep.subr.bf16.mxu0 0
        %1689 = vmatpush1.bf16.msra.mxu0 0
        %1690 = vmatprep.subr.bf16.mxu0 0
        %1691 = vmatpush1.bf16.msra.mxu0 0
        %1692 = vmatprep.subr.bf16.mxu0 0
        %1693 = vmatpush1.bf16.msra.mxu0 0
        %1694 = vmatprep.subr.bf16.mxu0 0
        %1695 = vmatpush1.bf16.msra.mxu0 0
        %1696 = vmatprep.subr.bf16.mxu0 0
        %1697 = vmatpush1.bf16.msra.mxu0 0
        %1698 = vmatprep.mubr.bf16.mxu0 0
        %1699 = vmatmul.mubr.bf16.gmra.mrb[0].mxu0 %v1664
        %v1700 = vpop.f32.mrb[0].mxu0
        %v1701 = vadd.f32 %v1636, %v1700
        %v1702 = vpop.f32.mrb[0].mxu0
        %v1703 = vpop.f32.mrb[0].mxu0
        %v1704 = vpop.f32.mrb[0].mxu0
        %1705 = vdwg.mxu0
        %vm1706 = vcmask 261120
        %1707 = vst.msk [vmem:[%s863] sm:$0xff] %vm1706, %v1701
        %1709 = vrot.lane.b32.xlu0 %v1701, 96
        %v1710 = vpop.permute.xlu0 %1709
        %1712 = vst.msk [vmem:[%s870] sm:$0xff] %vm1706, %v1710
        %v1713 = vld [vmem:[%s874] sm:$0xff]
        %v1714 = vmul.f32 %v1701, 0.5
        %v1715 = vmul.f32 %v1714, 1.442695
        %v1716 = vpow.pop %v1715
        %1718 = vrot.lane.b32.xlu0 %v1716, 96
        %v1719 = vpop.permute.xlu0 %1718
        %v1721 = vmul.f32 %v1713, %v1719
        %v1722 = vadd.f32 %v1701, %v1721
        %v1723 = vld [vmem:[%s878] sm:$0xff]
        %v1724 = vmul.f32 %v1722, %v1723
        %v1725 = vsel %vm1706, %v1724, 0.0
        %1726 = vadd.xlane.f32.xlu0 %v1725
        %v1727 = vpop.xlane.xlu0 %1726
        %1728 = vst [vmem:[%s882] sm:$0xff] %v1727
        %v1729 = vpack.c.bf16 %v1722, %v1722
        %v1730 = vld [vmem:[#allocation7] sm:$0xf]
        %v1731 = vld [vmem:[#allocation7 + $0x4] sm:$0xf]
        %v1732 = vld [vmem:[#allocation7 + $0x8] sm:$0xf]
        %v1733 = vld [vmem:[#allocation7 + $0xc] sm:$0xf]
        %v1734 = vld [vmem:[#allocation8] sm:$0x1]
        %v1736 = vlaneseq
        %v1737 = vshrl.u32 %v1736, 7
        %v1738 = vsub.s32 0, %v1737
        %v1739 = vrot.slane %v1734, %v1738
        %v1745 = vunpack.c.l.b16 %v1730
        %v1746 = vunpack.c.l.b16 %v1731
        %v1747 = vunpack.c.l.b16 %v1732
        %v1748 = vunpack.c.l.b16 %v1733
        %v1749 = vpack.c.b16 %v1746, %v1745
        %v1750 = vpack.c.b16 %v1748, %v1747
        %v1754 = vsel %vm1706, %v1729, 0
        %1756 = vmatprep.subr.bf16.mxu0 0
        %1757 = vmatpush1.bf16.msra.mxu0 %v1749
        %1758 = vmatprep.subr.bf16.mxu0 0
        %1759 = vmatpush1.bf16.msra.mxu0 %v1750
        %1760 = vmatprep.subr.bf16.mxu0 0
        %1761 = vmatpush1.bf16.msra.mxu0 0
        %1762 = vmatprep.subr.bf16.mxu0 0
        %1763 = vmatpush1.bf16.msra.mxu0 0
        %1764 = vmatprep.subr.bf16.mxu0 0
        %1765 = vmatpush1.bf16.msra.mxu0 0
        %1766 = vmatprep.subr.bf16.mxu0 0
        %1767 = vmatpush1.bf16.msra.mxu0 0
        %1768 = vmatprep.subr.bf16.mxu0 0
        %1769 = vmatpush1.bf16.msra.mxu0 0
        %1770 = vmatprep.subr.bf16.mxu0 0
        %1771 = vmatpush1.bf16.msra.mxu0 0
        %1772 = vmatprep.subr.bf16.mxu0 0
        %1773 = vmatpush1.bf16.msra.mxu0 0
        %1774 = vmatprep.subr.bf16.mxu0 0
        %1775 = vmatpush1.bf16.msra.mxu0 0
        %1776 = vmatprep.subr.bf16.mxu0 0
        %1777 = vmatpush1.bf16.msra.mxu0 0
        %1778 = vmatprep.subr.bf16.mxu0 0
        %1779 = vmatpush1.bf16.msra.mxu0 0
        %1780 = vmatprep.subr.bf16.mxu0 0
        %1781 = vmatpush1.bf16.msra.mxu0 0
        %1782 = vmatprep.subr.bf16.mxu0 0
        %1783 = vmatpush1.bf16.msra.mxu0 0
        %1784 = vmatprep.subr.bf16.mxu0 0
        %1785 = vmatpush1.bf16.msra.mxu0 0
        %1786 = vmatprep.subr.bf16.mxu0 0
        %1787 = vmatpush1.bf16.msra.mxu0 0
        %1788 = vmatprep.mubr.bf16.mxu0 0
        %1789 = vmatmul.mubr.bf16.gmra.mrb[0].mxu0 %v1754
        %v1790 = vpop.f32.mrb[0].mxu0
        %v1791 = vadd.f32 %v1739, %v1790
        %v1792 = vpop.f32.mrb[0].mxu0
        %v1793 = vpop.f32.mrb[0].mxu0
        %v1794 = vpop.f32.mrb[0].mxu0
        %1795 = vdwg.mxu0
        %v1796 = vmax.f32 %v1791, 0.0
        %v1797 = vpack.c.bf16 %v1796, %v1796
        %v1798 = vld [vmem:[#allocation10] sm:$0xf]
        %v1799 = vld [vmem:[#allocation10 + $0x4] sm:$0xf]
        %v1800 = vld [vmem:[#allocation10 + $0x8] sm:$0xf]
        %v1801 = vld [vmem:[#allocation10 + $0xc] sm:$0xf]
        %v1802 = vld [vmem:[#allocation10 + $0x10] sm:$0xf]
        %v1803 = vld [vmem:[#allocation10 + $0x14] sm:$0xf]
        %v1804 = vld [vmem:[#allocation10 + $0x18] sm:$0xf]
        %v1805 = vld [vmem:[#allocation10 + $0x1c] sm:$0xf]
        %v1806 = vld [vmem:[#allocation11] sm:$0x1]
        %v1808 = vlaneseq
        %v1809 = vshrl.u32 %v1808, 7
        %v1810 = vsub.s32 0, %v1809
        %v1811 = vrot.slane %v1806, %v1810
        %v1821 = vunpack.c.l.b16 %v1798
        %v1822 = vunpack.c.l.b16 %v1799
        %v1823 = vunpack.c.l.b16 %v1800
        %v1824 = vunpack.c.l.b16 %v1801
        %v1825 = vunpack.c.l.b16 %v1802
        %v1826 = vunpack.c.l.b16 %v1803
        %v1827 = vunpack.c.l.b16 %v1804
        %v1828 = vunpack.c.l.b16 %v1805
        %v1829 = vpack.c.b16 %v1822, %v1821
        %v1830 = vpack.c.b16 %v1824, %v1823
        %v1831 = vpack.c.b16 %v1826, %v1825
        %v1832 = vpack.c.b16 %v1828, %v1827
        %v1838 = vsel %vm1662, %v1797, 0
        %1840 = vmatprep.subr.bf16.mxu0 0
        %1841 = vmatpush1.bf16.msra.mxu0 %v1829
        %1842 = vmatprep.subr.bf16.mxu0 0
        %1843 = vmatpush1.bf16.msra.mxu0 %v1830
        %1844 = vmatprep.subr.bf16.mxu0 0
        %1845 = vmatpush1.bf16.msra.mxu0 %v1831
        %1846 = vmatprep.subr.bf16.mxu0 0
        %1847 = vmatpush1.bf16.msra.mxu0 %v1832
        %1848 = vmatprep.subr.bf16.mxu0 0
        %1849 = vmatpush1.bf16.msra.mxu0 0
        %1850 = vmatprep.subr.bf16.mxu0 0
        %1851 = vmatpush1.bf16.msra.mxu0 0
        %1852 = vmatprep.subr.bf16.mxu0 0
        %1853 = vmatpush1.bf16.msra.mxu0 0
        %1854 = vmatprep.subr.bf16.mxu0 0
        %1855 = vmatpush1.bf16.msra.mxu0 0
        %1856 = vmatprep.subr.bf16.mxu0 0
        %1857 = vmatpush1.bf16.msra.mxu0 0
        %1858 = vmatprep.subr.bf16.mxu0 0
        %1859 = vmatpush1.bf16.msra.mxu0 0
        %1860 = vmatprep.subr.bf16.mxu0 0
        %1861 = vmatpush1.bf16.msra.mxu0 0
        %1862 = vmatprep.subr.bf16.mxu0 0
        %1863 = vmatpush1.bf16.msra.mxu0 0
        %1864 = vmatprep.subr.bf16.mxu0 0
        %1865 = vmatpush1.bf16.msra.mxu0 0
        %1866 = vmatprep.subr.bf16.mxu0 0
        %1867 = vmatpush1.bf16.msra.mxu0 0
        %1868 = vmatprep.subr.bf16.mxu0 0
        %1869 = vmatpush1.bf16.msra.mxu0 0
        %1870 = vmatprep.subr.bf16.mxu0 0
        %1871 = vmatpush1.bf16.msra.mxu0 0
        %1872 = vmatprep.mubr.bf16.mxu0 0
        %1873 = vmatmul.mubr.bf16.gmra.mrb[0].mxu0 %v1838
        %v1874 = vpop.f32.mrb[0].mxu0
        %v1875 = vadd.f32 %v1811, %v1874
        %v1876 = vpop.f32.mrb[0].mxu0
        %v1877 = vpop.f32.mrb[0].mxu0
        %v1878 = vpop.f32.mrb[0].mxu0
        %1879 = vdwg.mxu0
        %v1880 = vmax.f32 %v1875, 0.0
        %v1881 = vpack.c.bf16 %v1880, %v1880
        %v1882 = vld [vmem:[#allocation13] sm:$0xf]
        %v1883 = vld [vmem:[#allocation13 + $0x4] sm:$0xf]
        %v1884 = vld [vmem:[#allocation13 + $0x8] sm:$0xf]
        %v1885 = vld [vmem:[#allocation13 + $0xc] sm:$0xf]
        %v1886 = vld [vmem:[#allocation13 + $0x10] sm:$0xf]
        %v1887 = vld [vmem:[#allocation13 + $0x14] sm:$0xf]
        %v1888 = vld [vmem:[#allocation13 + $0x18] sm:$0xf]
        %v1889 = vld [vmem:[#allocation13 + $0x1c] sm:$0xf]
        %v1890 = vld [vmem:[#allocation13 + $0x20] sm:$0xf]
        %v1891 = vld [vmem:[#allocation13 + $0x24] sm:$0xf]
        %v1892 = vld [vmem:[#allocation13 + $0x28] sm:$0xf]
        %v1893 = vld [vmem:[#allocation13 + $0x2c] sm:$0xf]
        %v1894 = vld [vmem:[#allocation14] sm:$0x1]
        %v1896 = vlaneseq
        %v1897 = vshrl.u32 %v1896, 7
        %v1898 = vsub.s32 0, %v1897
        %v1899 = vrot.slane %v1894, %v1898
        %v1913 = vunpack.c.l.b16 %v1882
        %v1914 = vunpack.c.l.b16 %v1883
        %v1915 = vunpack.c.l.b16 %v1884
        %v1916 = vunpack.c.l.b16 %v1885
        %v1917 = vunpack.c.l.b16 %v1886
        %v1918 = vunpack.c.l.b16 %v1887
        %v1919 = vunpack.c.l.b16 %v1888
        %v1920 = vunpack.c.l.b16 %v1889
        %v1921 = vunpack.c.l.b16 %v1890
        %v1922 = vunpack.c.l.b16 %v1891
        %v1923 = vunpack.c.l.b16 %v1892
        %v1924 = vunpack.c.l.b16 %v1893
        %v1925 = vpack.c.b16 %v1914, %v1913
        %v1926 = vpack.c.b16 %v1916, %v1915
        %v1927 = vpack.c.b16 %v1918, %v1917
        %v1928 = vpack.c.b16 %v1920, %v1919
        %v1929 = vpack.c.b16 %v1922, %v1921
        %v1930 = vpack.c.b16 %v1924, %v1923
        %v1938 = vsel %vm1577, %v1881, 0
        %1940 = vmatprep.subr.bf16.mxu0 0
        %1941 = vmatpush1.bf16.msra.mxu0 %v1925
        %1942 = vmatprep.subr.bf16.mxu0 0
        %1943 = vmatpush1.bf16.msra.mxu0 %v1926
        %1944 = vmatprep.subr.bf16.mxu0 0
        %1945 = vmatpush1.bf16.msra.mxu0 %v1927
        %1946 = vmatprep.subr.bf16.mxu0 0
        %1947 = vmatpush1.bf16.msra.mxu0 %v1928
        %1948 = vmatprep.subr.bf16.mxu0 0
        %1949 = vmatpush1.bf16.msra.mxu0 %v1929
        %1950 = vmatprep.subr.bf16.mxu0 0
        %1951 = vmatpush1.bf16.msra.mxu0 %v1930
        %1952 = vmatprep.subr.bf16.mxu0 0
        %1953 = vmatpush1.bf16.msra.mxu0 0
        %1954 = vmatprep.subr.bf16.mxu0 0
        %1955 = vmatpush1.bf16.msra.mxu0 0
        %1956 = vmatprep.subr.bf16.mxu0 0
        %1957 = vmatpush1.bf16.msra.mxu0 0
        %1958 = vmatprep.subr.bf16.mxu0 0
        %1959 = vmatpush1.bf16.msra.mxu0 0
        %1960 = vmatprep.subr.bf16.mxu0 0
        %1961 = vmatpush1.bf16.msra.mxu0 0
        %1962 = vmatprep.subr.bf16.mxu0 0
        %1963 = vmatpush1.bf16.msra.mxu0 0
        %1964 = vmatprep.subr.bf16.mxu0 0
        %1965 = vmatpush1.bf16.msra.mxu0 0
        %1966 = vmatprep.subr.bf16.mxu0 0
        %1967 = vmatpush1.bf16.msra.mxu0 0
        %1968 = vmatprep.subr.bf16.mxu0 0
        %1969 = vmatpush1.bf16.msra.mxu0 0
        %1970 = vmatprep.subr.bf16.mxu0 0
        %1971 = vmatpush1.bf16.msra.mxu0 0
        %1972 = vmatprep.mubr.bf16.mxu0 0
        %1973 = vmatmul.mubr.bf16.gmra.mrb[0].mxu0 %v1938
        %v1974 = vpop.f32.mrb[0].mxu0
        %v1975 = vadd.f32 %v1899, %v1974
        %v1976 = vpop.f32.mrb[0].mxu0
        %v1977 = vpop.f32.mrb[0].mxu0
        %v1978 = vpop.f32.mrb[0].mxu0
        %1979 = vdwg.mxu0
        %v1980 = vmax.f32 %v1975, 0.0
        %v1981 = vpack.c.bf16 %v1980, %v1980
        %v1982 = vld [vmem:[#allocation16] sm:$0xff]
        %v1983 = vld [vmem:[#allocation16 + $0x8] sm:$0xff]
        %v1984 = vld [vmem:[#allocation16 + $0x10] sm:$0xff]
        %v1985 = vld [vmem:[#allocation16 + $0x18] sm:$0xff]
        %v1986 = vld [vmem:[#allocation16 + $0x20] sm:$0xff]
        %v1987 = vld [vmem:[#allocation16 + $0x28] sm:$0xff]
        %v1988 = vld [vmem:[#allocation16 + $0x30] sm:$0xff]
        %v1989 = vld [vmem:[#allocation16 + $0x38] sm:$0xff]
        %v1990 = vld [vmem:[#allocation16 + $0x40] sm:$0xff]
        %v1991 = vld [vmem:[#allocation16 + $0x48] sm:$0xff]
        %v1992 = vld [vmem:[#allocation16 + $0x50] sm:$0xff]
        %v1993 = vld [vmem:[#allocation16 + $0x58] sm:$0xff]
        %v1994 = vld [vmem:[#allocation16 + $0x60] sm:$0xff]
        %v1995 = vld [vmem:[#allocation16 + $0x68] sm:$0xff]
        %v1996 = vld [vmem:[#allocation16 + $0x70] sm:$0xff]
        %v1997 = vld [vmem:[#allocation16 + $0x78] sm:$0xff]
        %v1998 = vld [vmem:[#allocation16 + $0x80] sm:$0xff]
        %v1999 = vld [vmem:[#allocation16 + $0x88] sm:$0xff]
        %v2000 = vld [vmem:[#allocation16 + $0x90] sm:$0xff]
        %v2001 = vld [vmem:[#allocation16 + $0x98] sm:$0xff]
        %v2002 = vld [vmem:[#allocation16 + $0xa0] sm:$0xff]
        %v2003 = vld [vmem:[#allocation16 + $0xa8] sm:$0xff]
        %v2004 = vld [vmem:[#allocation16 + $0xb0] sm:$0xff]
        %v2005 = vld [vmem:[#allocation16 + $0xb8] sm:$0xff]
        %v2006 = vld [vmem:[#allocation16 + $0xc0] sm:$0xff]
        %v2007 = vld [vmem:[#allocation16 + $0xc8] sm:$0xff]
        %v2008 = vld [vmem:[#allocation16 + $0xd0] sm:$0xff]
        %v2009 = vld [vmem:[#allocation16 + $0xd8] sm:$0xff]
        %v2010 = vld [vmem:[#allocation16 + $0xe0] sm:$0xff]
        %v2011 = vld [vmem:[#allocation16 + $0xe8] sm:$0xff]
        %v2012 = vld [vmem:[#allocation16 + $0xf0] sm:$0xff]
        %v2013 = vld [vmem:[#allocation16 + $0xf8] sm:$0xff]
        %v2014 = vld [vmem:[#allocation16 + $0x100] sm:$0xff]
        %v2015 = vld [vmem:[#allocation16 + $0x108] sm:$0xff]
        %v2016 = vld [vmem:[#allocation16 + $0x110] sm:$0xff]
        %v2017 = vld [vmem:[#allocation16 + $0x118] sm:$0xff]
        %v2018 = vld [vmem:[#allocation16 + $0x120] sm:$0xff]
        %v2019 = vld [vmem:[#allocation16 + $0x128] sm:$0xff]
        %v2020 = vld [vmem:[#allocation16 + $0x130] sm:$0xff]
        %v2021 = vld [vmem:[#allocation16 + $0x138] sm:$0xff]
        %v2022 = vld [vmem:[#allocation16 + $0x140] sm:$0xff]
        %v2023 = vld [vmem:[#allocation16 + $0x148] sm:$0xff]
        %v2024 = vld [vmem:[#allocation16 + $0x150] sm:$0xff]
        %v2025 = vld [vmem:[#allocation16 + $0x158] sm:$0xff]
        %v2026 = vld [vmem:[#allocation16 + $0x160] sm:$0xff]
        %v2027 = vld [vmem:[#allocation16 + $0x168] sm:$0xff]
        %v2028 = vld [vmem:[#allocation16 + $0x170] sm:$0xff]
        %v2029 = vld [vmem:[#allocation16 + $0x178] sm:$0xff]
        %v2030 = vld [vmem:[#allocation17] sm:$0x3f]
        %v2032 = vlaneseq
        %v2033 = vshrl.u32 %v2032, 7
        %v2034 = vsub.s32 0, %v2033
        %v2035 = vrot.slane %v2030, %v2034
        %v2036 = vlaneseq
        %v2037 = vshrl.u32 %v2036, 7
        %v2038 = vsub.s32 1, %v2037
        %v2039 = vrot.slane %v2030, %v2038
        %v2040 = vlaneseq
        %v2041 = vshrl.u32 %v2040, 7
        %v2042 = vsub.s32 2, %v2041
        %v2043 = vrot.slane %v2030, %v2042
        %v2044 = vlaneseq
        %v2045 = vshrl.u32 %v2044, 7
        %v2046 = vsub.s32 3, %v2045
        %v2047 = vrot.slane %v2030, %v2046
        %v2048 = vlaneseq
        %v2049 = vshrl.u32 %v2048, 7
        %v2050 = vsub.s32 4, %v2049
        %v2051 = vrot.slane %v2030, %v2050
        %v2052 = vlaneseq
        %v2053 = vshrl.u32 %v2052, 7
        %v2054 = vsub.s32 5, %v2053
        %v2055 = vrot.slane %v2030, %v2054
        %v2110 = vunpack.c.l.b16 %v1982
        %v2111 = vunpack.c.h.b16 %v1982
        %v2112 = vunpack.c.l.b16 %v1983
        %v2113 = vunpack.c.h.b16 %v1983
        %v2114 = vunpack.c.l.b16 %v1984
        %v2115 = vunpack.c.h.b16 %v1984
        %v2116 = vunpack.c.l.b16 %v1985
        %v2117 = vunpack.c.h.b16 %v1985
        %v2118 = vunpack.c.l.b16 %v1986
        %v2119 = vunpack.c.h.b16 %v1986
        %v2120 = vunpack.c.l.b16 %v1987
        %v2121 = vunpack.c.h.b16 %v1987
        %v2122 = vunpack.c.l.b16 %v1988
        %v2123 = vunpack.c.h.b16 %v1988
        %v2124 = vunpack.c.l.b16 %v1989
        %v2125 = vunpack.c.h.b16 %v1989
        %v2126 = vunpack.c.l.b16 %v1990
        %v2127 = vunpack.c.h.b16 %v1990
        %v2128 = vunpack.c.l.b16 %v1991
        %v2129 = vunpack.c.h.b16 %v1991
        %v2130 = vunpack.c.l.b16 %v1992
        %v2131 = vunpack.c.h.b16 %v1992
        %v2132 = vunpack.c.l.b16 %v1993
        %v2133 = vunpack.c.h.b16 %v1993
        %v2134 = vunpack.c.l.b16 %v1994
        %v2135 = vunpack.c.h.b16 %v1994
        %v2136 = vunpack.c.l.b16 %v1995
        %v2137 = vunpack.c.h.b16 %v1995
        %v2138 = vunpack.c.l.b16 %v1996
        %v2139 = vunpack.c.h.b16 %v1996
        %v2140 = vunpack.c.l.b16 %v1997
        %v2141 = vunpack.c.h.b16 %v1997
        %v2142 = vunpack.c.l.b16 %v1998
        %v2143 = vunpack.c.h.b16 %v1998
        %v2144 = vunpack.c.l.b16 %v1999
        %v2145 = vunpack.c.h.b16 %v1999
        %v2146 = vunpack.c.l.b16 %v2000
        %v2147 = vunpack.c.h.b16 %v2000
        %v2148 = vunpack.c.l.b16 %v2001
        %v2149 = vunpack.c.h.b16 %v2001
        %v2150 = vunpack.c.l.b16 %v2002
        %v2151 = vunpack.c.h.b16 %v2002
        %v2152 = vunpack.c.l.b16 %v2003
        %v2153 = vunpack.c.h.b16 %v2003
        %v2154 = vunpack.c.l.b16 %v2004
        %v2155 = vunpack.c.h.b16 %v2004
        %v2156 = vunpack.c.l.b16 %v2005
        %v2157 = vunpack.c.h.b16 %v2005
        %v2158 = vunpack.c.l.b16 %v2006
        %v2159 = vunpack.c.h.b16 %v2006
        %v2160 = vunpack.c.l.b16 %v2007
        %v2161 = vunpack.c.h.b16 %v2007
        %v2162 = vunpack.c.l.b16 %v2008
        %v2163 = vunpack.c.h.b16 %v2008
        %v2164 = vunpack.c.l.b16 %v2009
        %v2165 = vunpack.c.h.b16 %v2009
        %v2166 = vunpack.c.l.b16 %v2010
        %v2167 = vunpack.c.h.b16 %v2010
        %v2168 = vunpack.c.l.b16 %v2011
        %v2169 = vunpack.c.h.b16 %v2011
        %v2170 = vunpack.c.l.b16 %v2012
        %v2171 = vunpack.c.h.b16 %v2012
        %v2172 = vunpack.c.l.b16 %v2013
        %v2173 = vunpack.c.h.b16 %v2013
        %v2174 = vunpack.c.l.b16 %v2014
        %v2175 = vunpack.c.h.b16 %v2014
        %v2176 = vunpack.c.l.b16 %v2015
        %v2177 = vunpack.c.h.b16 %v2015
        %v2178 = vunpack.c.l.b16 %v2016
        %v2179 = vunpack.c.h.b16 %v2016
        %v2180 = vunpack.c.l.b16 %v2017
        %v2181 = vunpack.c.h.b16 %v2017
        %v2182 = vunpack.c.l.b16 %v2018
        %v2183 = vunpack.c.h.b16 %v2018
        %v2184 = vunpack.c.l.b16 %v2019
        %v2185 = vunpack.c.h.b16 %v2019
        %v2186 = vunpack.c.l.b16 %v2020
        %v2187 = vunpack.c.h.b16 %v2020
        %v2188 = vunpack.c.l.b16 %v2021
        %v2189 = vunpack.c.h.b16 %v2021
        %v2190 = vunpack.c.l.b16 %v2022
        %v2191 = vunpack.c.h.b16 %v2022
        %v2192 = vunpack.c.l.b16 %v2023
        %v2193 = vunpack.c.h.b16 %v2023
        %v2194 = vunpack.c.l.b16 %v2024
        %v2195 = vunpack.c.h.b16 %v2024
        %v2196 = vunpack.c.l.b16 %v2025
        %v2197 = vunpack.c.h.b16 %v2025
        %v2198 = vunpack.c.l.b16 %v2026
        %v2199 = vunpack.c.h.b16 %v2026
        %v2200 = vunpack.c.l.b16 %v2027
        %v2201 = vunpack.c.h.b16 %v2027
        %v2202 = vunpack.c.l.b16 %v2028
        %v2203 = vunpack.c.h.b16 %v2028
        %v2204 = vunpack.c.l.b16 %v2029
        %v2205 = vunpack.c.h.b16 %v2029
        %v2206 = vpack.c.b16 %v2116, %v2110
        %v2207 = vpack.c.b16 %v2117, %v2111
        %v2208 = vpack.c.b16 %v2118, %v2112
        %v2209 = vpack.c.b16 %v2119, %v2113
        %v2210 = vpack.c.b16 %v2120, %v2114
        %v2211 = vpack.c.b16 %v2121, %v2115
        %v2212 = vpack.c.b16 %v2128, %v2122
        %v2213 = vpack.c.b16 %v2129, %v2123
        %v2214 = vpack.c.b16 %v2130, %v2124
        %v2215 = vpack.c.b16 %v2131, %v2125
        %v2216 = vpack.c.b16 %v2132, %v2126
        %v2217 = vpack.c.b16 %v2133, %v2127
        %v2218 = vpack.c.b16 %v2140, %v2134
        %v2219 = vpack.c.b16 %v2141, %v2135
        %v2220 = vpack.c.b16 %v2142, %v2136
        %v2221 = vpack.c.b16 %v2143, %v2137
        %v2222 = vpack.c.b16 %v2144, %v2138
        %v2223 = vpack.c.b16 %v2145, %v2139
        %v2224 = vpack.c.b16 %v2152, %v2146
        %v2225 = vpack.c.b16 %v2153, %v2147
        %v2226 = vpack.c.b16 %v2154, %v2148
        %v2227 = vpack.c.b16 %v2155, %v2149
        %v2228 = vpack.c.b16 %v2156, %v2150
        %v2229 = vpack.c.b16 %v2157, %v2151
        %v2230 = vpack.c.b16 %v2164, %v2158
        %v2231 = vpack.c.b16 %v2165, %v2159
        %v2232 = vpack.c.b16 %v2166, %v2160
        %v2233 = vpack.c.b16 %v2167, %v2161
        %v2234 = vpack.c.b16 %v2168, %v2162
        %v2235 = vpack.c.b16 %v2169, %v2163
        %v2236 = vpack.c.b16 %v2176, %v2170
        %v2237 = vpack.c.b16 %v2177, %v2171
        %v2238 = vpack.c.b16 %v2178, %v2172
        %v2239 = vpack.c.b16 %v2179, %v2173
        %v2240 = vpack.c.b16 %v2180, %v2174
        %v2241 = vpack.c.b16 %v2181, %v2175
        %v2242 = vpack.c.b16 %v2188, %v2182
        %v2243 = vpack.c.b16 %v2189, %v2183
        %v2244 = vpack.c.b16 %v2190, %v2184
        %v2245 = vpack.c.b16 %v2191, %v2185
        %v2246 = vpack.c.b16 %v2192, %v2186
        %v2247 = vpack.c.b16 %v2193, %v2187
        %v2248 = vpack.c.b16 %v2200, %v2194
        %v2249 = vpack.c.b16 %v2201, %v2195
        %v2250 = vpack.c.b16 %v2202, %v2196
        %v2251 = vpack.c.b16 %v2203, %v2197
        %v2252 = vpack.c.b16 %v2204, %v2198
        %v2253 = vpack.c.b16 %v2205, %v2199
        %2302 = vmatprep.subr.bf16.mxu0 %v2207
        %2303 = vmatpush1.bf16.msra.mxu0 %v2206
        %2304 = vmatprep.subr.bf16.mxu0 %v2213
        %2305 = vmatpush1.bf16.msra.mxu0 %v2212
        %2306 = vmatprep.subr.bf16.mxu0 %v2219
        %2307 = vmatpush1.bf16.msra.mxu0 %v2218
        %2308 = vmatprep.subr.bf16.mxu0 %v2225
        %2309 = vmatpush1.bf16.msra.mxu0 %v2224
        %2310 = vmatprep.subr.bf16.mxu0 %v2231
        %2311 = vmatpush1.bf16.msra.mxu0 %v2230
        %2312 = vmatprep.subr.bf16.mxu0 %v2237
        %2313 = vmatpush1.bf16.msra.mxu0 %v2236
        %2314 = vmatprep.subr.bf16.mxu0 %v2243
        %2315 = vmatpush1.bf16.msra.mxu0 %v2242
        %2316 = vmatprep.subr.bf16.mxu0 %v2249
        %2317 = vmatpush1.bf16.msra.mxu0 %v2248
        %2318 = vmatprep.subr.bf16.mxu0 0
        %2319 = vmatpush1.bf16.msra.mxu0 0
        %2320 = vmatprep.subr.bf16.mxu0 0
        %2321 = vmatpush1.bf16.msra.mxu0 0
        %2322 = vmatprep.subr.bf16.mxu0 0
        %2323 = vmatpush1.bf16.msra.mxu0 0
        %2324 = vmatprep.subr.bf16.mxu0 0
        %2325 = vmatpush1.bf16.msra.mxu0 0
        %2326 = vmatprep.subr.bf16.mxu0 0
        %2327 = vmatpush1.bf16.msra.mxu0 0
        %2328 = vmatprep.subr.bf16.mxu0 0
        %2329 = vmatpush1.bf16.msra.mxu0 0
        %2330 = vmatprep.subr.bf16.mxu0 0
        %2331 = vmatpush1.bf16.msra.mxu0 0
        %2332 = vmatprep.subr.bf16.mxu0 0
        %2333 = vmatpush1.bf16.msra.mxu0 0
        %2334 = vmatprep.mubr.bf16.mxu0 0
        %2335 = vmatmul.mubr.bf16.gmra.mrb[0].mxu0 %v1981
        %v2336 = vpop.f32.mrb[0].mxu0
        %v2337 = vadd.f32 %v2035, %v2336
        %v2338 = vpop.f32.mrb[0].mxu0
        %v2339 = vadd.f32 %v2039, %v2338
        %v2340 = vpop.f32.mrb[0].mxu0
        %v2341 = vpop.f32.mrb[0].mxu0
        %2342 = vdwg.mxu0
        %2343 = vmatprep.subr.bf16.mxu0 %v2209
        %2344 = vmatpush1.bf16.msra.mxu0 %v2208
        %2345 = vmatprep.subr.bf16.mxu0 %v2215
        %2346 = vmatpush1.bf16.msra.mxu0 %v2214
        %2347 = vmatprep.subr.bf16.mxu0 %v2221
        %2348 = vmatpush1.bf16.msra.mxu0 %v2220
        %2349 = vmatprep.subr.bf16.mxu0 %v2227
        %2350 = vmatpush1.bf16.msra.mxu0 %v2226
        %2351 = vmatprep.subr.bf16.mxu0 %v2233
        %2352 = vmatpush1.bf16.msra.mxu0 %v2232
        %2353 = vmatprep.subr.bf16.mxu0 %v2239
        %2354 = vmatpush1.bf16.msra.mxu0 %v2238
        %2355 = vmatprep.subr.bf16.mxu0 %v2245
        %2356 = vmatpush1.bf16.msra.mxu0 %v2244
        %2357 = vmatprep.subr.bf16.mxu0 %v2251
        %2358 = vmatpush1.bf16.msra.mxu0 %v2250
        %2359 = vmatprep.subr.bf16.mxu0 0
        %2360 = vmatpush1.bf16.msra.mxu0 0
        %2361 = vmatprep.subr.bf16.mxu0 0
        %2362 = vmatpush1.bf16.msra.mxu0 0
        %2363 = vmatprep.subr.bf16.mxu0 0
        %2364 = vmatpush1.bf16.msra.mxu0 0
        %2365 = vmatprep.subr.bf16.mxu0 0
        %2366 = vmatpush1.bf16.msra.mxu0 0
        %2367 = vmatprep.subr.bf16.mxu0 0
        %2368 = vmatpush1.bf16.msra.mxu0 0
        %2369 = vmatprep.subr.bf16.mxu0 0
        %2370 = vmatpush1.bf16.msra.mxu0 0
        %2371 = vmatprep.subr.bf16.mxu0 0
        %2372 = vmatpush1.bf16.msra.mxu0 0
        %2373 = vmatprep.subr.bf16.mxu0 0
        %2374 = vmatpush1.bf16.msra.mxu0 0
        %2375 = vmatprep.mubr.bf16.mxu0 0
        %2376 = vmatmul.mubr.bf16.gmra.mrb[0].mxu0 %v1981
        %v2377 = vpop.f32.mrb[0].mxu0
        %v2378 = vadd.f32 %v2043, %v2377
        %v2379 = vpop.f32.mrb[0].mxu0
        %v2380 = vadd.f32 %v2047, %v2379
        %v2381 = vpop.f32.mrb[0].mxu0
        %v2382 = vpop.f32.mrb[0].mxu0
        %2383 = vdwg.mxu0
        %2384 = vmatprep.subr.bf16.mxu0 %v2211
        %2385 = vmatpush1.bf16.msra.mxu0 %v2210
        %2386 = vmatprep.subr.bf16.mxu0 %v2217
        %2387 = vmatpush1.bf16.msra.mxu0 %v2216
        %2388 = vmatprep.subr.bf16.mxu0 %v2223
        %2389 = vmatpush1.bf16.msra.mxu0 %v2222
        %2390 = vmatprep.subr.bf16.mxu0 %v2229
        %2391 = vmatpush1.bf16.msra.mxu0 %v2228
        %2392 = vmatprep.subr.bf16.mxu0 %v2235
        %2393 = vmatpush1.bf16.msra.mxu0 %v2234
        %2394 = vmatprep.subr.bf16.mxu0 %v2241
        %2395 = vmatpush1.bf16.msra.mxu0 %v2240
        %2396 = vmatprep.subr.bf16.mxu0 %v2247
        %2397 = vmatpush1.bf16.msra.mxu0 %v2246
        %2398 = vmatprep.subr.bf16.mxu0 %v2253
        %2399 = vmatpush1.bf16.msra.mxu0 %v2252
        %2400 = vmatprep.subr.bf16.mxu0 0
        %2401 = vmatpush1.bf16.msra.mxu0 0
        %2402 = vmatprep.subr.bf16.mxu0 0
        %2403 = vmatpush1.bf16.msra.mxu0 0
        %2404 = vmatprep.subr.bf16.mxu0 0
        %2405 = vmatpush1.bf16.msra.mxu0 0
        %2406 = vmatprep.subr.bf16.mxu0 0
        %2407 = vmatpush1.bf16.msra.mxu0 0
        %2408 = vmatprep.subr.bf16.mxu0 0
        %2409 = vmatpush1.bf16.msra.mxu0 0
        %2410 = vmatprep.subr.bf16.mxu0 0
        %2411 = vmatpush1.bf16.msra.mxu0 0
        %2412 = vmatprep.subr.bf16.mxu0 0
        %2413 = vmatpush1.bf16.msra.mxu0 0
        %2414 = vmatprep.subr.bf16.mxu0 0
        %2415 = vmatpush1.bf16.msra.mxu0 0
        %2416 = vmatprep.mubr.bf16.mxu0 0
        %2417 = vmatmul.mubr.bf16.gmra.mrb[0].mxu0 %v1981
        %v2418 = vpop.f32.mrb[0].mxu0
        %v2419 = vadd.f32 %v2051, %v2418
        %v2420 = vpop.f32.mrb[0].mxu0
        %v2421 = vadd.f32 %v2055, %v2420
        %v2422 = vpop.f32.mrb[0].mxu0
        %v2423 = vpop.f32.mrb[0].mxu0
        %2424 = vdwg.mxu0
        %v2425 = vxor.u32 %v2337, 2147483648
        %v2426 = vxor.u32 %v2339, 2147483648
        %v2427 = vxor.u32 %v2378, 2147483648
        %v2428 = vxor.u32 %v2380, 2147483648
        %v2429 = vxor.u32 %v2419, 2147483648
        %v2430 = vxor.u32 %v2421, 2147483648
        %v2431 = vmul.f32 %v2425, 1.442695
        %v2432 = vpow.pop %v2431
        %v2433 = vmul.f32 %v2426, 1.442695
        %v2434 = vpow.pop %v2433
        %v2435 = vmul.f32 %v2427, 1.442695
        %v2436 = vpow.pop %v2435
        %v2437 = vmul.f32 %v2428, 1.442695
        %v2438 = vpow.pop %v2437
        %v2439 = vmul.f32 %v2429, 1.442695
        %v2440 = vpow.pop %v2439
        %v2441 = vmul.f32 %v2430, 1.442695
        %v2442 = vpow.pop %v2441
        %v2443 = vadd.f32 %v2432, 1.0
        %v2444 = vadd.f32 %v2434, 1.0
        %v2445 = vadd.f32 %v2436, 1.0
        %v2446 = vadd.f32 %v2438, 1.0
        %v2447 = vadd.f32 %v2440, 1.0
        %v2448 = vadd.f32 %v2442, 1.0
        %v2449 = vrcp.pop %v2443
        %v2450 = vmul.f32 1.0, %v2449
        %v2451 = vrcp.pop %v2444
        %v2452 = vmul.f32 1.0, %v2451
        %v2453 = vrcp.pop %v2445
        %v2454 = vmul.f32 1.0, %v2453
        %v2455 = vrcp.pop %v2446
        %v2456 = vmul.f32 1.0, %v2455
        %v2457 = vrcp.pop %v2447
        %v2458 = vmul.f32 1.0, %v2457
        %v2459 = vrcp.pop %v2448
        %v2460 = vmul.f32 1.0, %v2459
        %2461 = vst [vmem:[%s850] sm:$0xff] %v2450
        %2462 = vst [vmem:[%s850 + $0x8] sm:$0xff] %v2452
        %2463 = vst [vmem:[%s850 + $0x10] sm:$0xff] %v2454
        %2464 = vst [vmem:[%s850 + $0x18] sm:$0xff] %v2456
        %2465 = vst [vmem:[%s850 + $0x20] sm:$0xff] %v2458
        %2466 = vst [vmem:[%s850 + $0x28] sm:$0xff] %v2460
        %s2467 = sand.u32 %s470, 1
        %s2468 = scalar_lea.sflag [#allocation4], %s2467
        %s2469 = sand.u32 %s470, 1
        %s2470 = smul.addr %s2469, 48
        %s2471 = scalar_lea.vmem [#allocation19], %s2470
        %p2472 = scmp.lt.s32.totalorder %s48, 1
        %s2473 = scalar_select %p2472, %s48, 1
        %s2474 = smul.addr %s2473, 8
        %s2475 = scalar_lea.vmem %s20, %s2474
        %s2476 = sand.u32 %s48, 1
        %s2477 = scalar_lea.sflag [#allocation21], %s2476
        %s2478 = sand.u32 %s522, 1
        %s2479 = smul.addr %s2478, 8
        %s2480 = scalar_lea.vmem [#allocation20], %s2479
        %s2481 = sand.u32 %s48, 1
        %s2482 = scalar_lea.sflag [#allocation21], %s2481
        %s2483 = sand.u32 %s548, 1
        %s2484 = smul.addr %s2483, 8
        %s2485 = scalar_lea.vmem [#allocation22], %s2484
        // Predicated region
        $region137: #{vae_forward.1} parent=95 // pred_check
          %p2486 = pneg %p480
        $region138: #{vae_forward.1} parent=95 // pred_check_branch
          %2488 = sbr.rel (%p2486) target = $region140
        $region139: #{vae_forward.1} parent=95 // pred_region
          %s2490 = ssub.s32 768, 768
          %2491 = vsyncadd %s2468, %s2490
          %s2492 = smul.addr %s48, 6
          %s2493 = smul.addr %s2492, 128
          %s2494 = scalar_lea.hbm %s19, %s2493
          %s2496 = sshll.u32 %s2471, 4
          %s2497 = int_to_ptr.vmem [resolvable:$true] %s2496
          %2499 = dma.vmem_to_hbm [thread:$0]  %s2497, 768, %s2494, %s2468
        $region140: #{vae_forward.1} parent=95 // pred_fallthru
          _
        // Predicated region
        $region141: #{vae_forward.1} parent=95 // pred_check
          %p2500 = pneg %p506
        $region142: #{vae_forward.1} parent=95 // pred_check_branch
          %2502 = sbr.rel (%p2500) target = $region144
        $region143: #{vae_forward.1} parent=95 // pred_region
          _
        $region144: #{vae_forward.1} parent=95 // pred_fallthru
          _
        // Predicated region
        $region145: #{vae_forward.1} parent=95 // pred_check
          %p2503 = pneg %p532
        $region146: #{vae_forward.1} parent=95 // pred_check_branch
          %2505 = sbr.rel (%p2503) target = $region148
        $region147: #{vae_forward.1} parent=95 // pred_region
          %s2507 = ssub.s32 128, 128
          %2508 = vsyncadd %s2477, %s2507
          %s2509 = smul.addr %s48, 128
          %s2510 = scalar_lea.hbm %s21, %s2509
          %s2512 = sshll.u32 %s2480, 4
          %s2513 = int_to_ptr.vmem [resolvable:$true] %s2512
          %2515 = dma.vmem_to_hbm [thread:$0]  %s2513, 128, %s2510, %s2477
        $region148: #{vae_forward.1} parent=95 // pred_fallthru
          _
        // Predicated region
        $region149: #{vae_forward.1} parent=95 // pred_check
          %p2516 = pneg %p558
        $region150: #{vae_forward.1} parent=95 // pred_check_branch
          %2518 = sbr.rel (%p2516) target = $region152
        $region151: #{vae_forward.1} parent=95 // pred_region
          %s2520 = ssub.s32 128, 128
          %2521 = vsyncadd %s2482, %s2520
          %s2522 = smul.addr %s48, 128
          %s2523 = scalar_lea.hbm %s22, %s2522
          %s2525 = sshll.u32 %s2485, 4
          %s2526 = int_to_ptr.vmem [resolvable:$true] %s2525
          %2528 = dma.vmem_to_hbm [thread:$0]  %s2526, 128, %s2523, %s2482
        $region152: #{vae_forward.1} parent=95 // pred_fallthru
          _
      $region96: #{vae_forward.1} parent=5 // pred_fallthru
        _
      %p2529 = scmp.le.s32.totalorder 2, %s43
      // Predicated region
      $region153: #{vae_forward.1} parent=5 // pred_check
        %p2530 = pneg %p2529
      $region154: #{vae_forward.1} parent=5 // pred_check_branch
        %2532 = sbr.rel (%p2530) target = $region156
      $region155: #{vae_forward.1} parent=5 // pred_region
        %s2533 = ssub.s32 %s43, 2
        // Predicated region
        $region157: #{vae_forward.1} parent=155 // pred_check
          %p2534 = pneg %p486
        $region158: #{vae_forward.1} parent=155 // pred_check_branch
          %2536 = sbr.rel (%p2534) target = $region160
        $region159: #{vae_forward.1} parent=155 // pred_region
          %s2537 = sand.u32 %s471, 1
          %s2538 = scalar_lea.sflag [#allocation4], %s2537
          %s2539 = sand.u32 %s471, 1
          %s2540 = smul.addr %s2539, 48
          %s2541 = scalar_lea.vmem [#allocation19], %s2540
          %2542 = dma.done %s2538, 768
        $region160: #{vae_forward.1} parent=155 // pred_fallthru
          _
        // Predicated region
        $region161: #{vae_forward.1} parent=155 // pred_check
          %p2543 = pneg %p512
        $region162: #{vae_forward.1} parent=155 // pred_check_branch
          %2545 = sbr.rel (%p2543) target = $region164
        $region163: #{vae_forward.1} parent=155 // pred_region
          %p2546 = scmp.lt.s32.totalorder %s49, 1
          %s2547 = scalar_select %p2546, %s49, 1
          %s2548 = smul.addr %s2547, 8
          %s2549 = scalar_lea.vmem %s20, %s2548
        $region164: #{vae_forward.1} parent=155 // pred_fallthru
          _
        // Predicated region
        $region165: #{vae_forward.1} parent=155 // pred_check
          %p2550 = pneg %p538
        $region166: #{vae_forward.1} parent=155 // pred_check_branch
          %2552 = sbr.rel (%p2550) target = $region168
        $region167: #{vae_forward.1} parent=155 // pred_region
          %s2553 = sand.u32 %s49, 1
          %s2554 = scalar_lea.sflag [#allocation21], %s2553
          %s2555 = sand.u32 %s523, 1
          %s2556 = smul.addr %s2555, 8
          %s2557 = scalar_lea.vmem [#allocation20], %s2556
          %2558 = dma.done %s2554, 128
        $region168: #{vae_forward.1} parent=155 // pred_fallthru
          _
        // Predicated region
        $region169: #{vae_forward.1} parent=155 // pred_check
          %p2559 = pneg %p564
        $region170: #{vae_forward.1} parent=155 // pred_check_branch
          %2561 = sbr.rel (%p2559) target = $region172
        $region171: #{vae_forward.1} parent=155 // pred_region
          %s2562 = sand.u32 %s49, 1
          %s2563 = scalar_lea.sflag [#allocation21], %s2562
          %s2564 = sand.u32 %s549, 1
          %s2565 = smul.addr %s2564, 8
          %s2566 = scalar_lea.vmem [#allocation22], %s2565
          %2567 = dma.done %s2563, 128
        $region172: #{vae_forward.1} parent=155 // pred_fallthru
          _
      $region156: #{vae_forward.1} parent=5 // pred_fallthru
        _
    $region6: #{vae_forward.1} parent=1 // loop_footer
      %s47 = sadd.s32 1, %s43
    $region7: #{vae_forward.1} parent=1 // loop_footer_branch
      %42 = sbr.rel target = $region3
    $region8: #{vae_forward.1} parent=1 // loop_exit
      _
    %2568 = vsyncpa [#allocation3], 1
    %s2569 = scalar_lea.sflag [#allocation3], 1
    %2570 = vsyncpa %s2569, 1
    %2571 = vsyncpa [#allocation6], 1
    %2572 = vsyncpa [#allocation9], 1
    %2573 = vsyncpa [#allocation12], 1
    %2574 = vsyncpa [#allocation15], 1
    %2575 = vsyncpa [#allocation18], 1
    %2576 = vsyncpa [#allocation4], 1
    %s2577 = scalar_lea.sflag [#allocation4], 1
    %2578 = vsyncpa %s2577, 1
    %2579 = vsyncpa [#allocation21], 1
    %s2580 = scalar_lea.sflag [#allocation21], 1
    %2581 = vsyncpa %s2580, 1

</llo_original>
